<compile_context>
chip_gen: v6e
topology: v6e:2x2x1
jax: 0.10.0
libtpu: 0.0.40
codegen_flags: <defaults>
</compile_context>

<pallas_src>
import functools
import math

import numpy as np
import jax
import jax.numpy as jnp
from jax import lax
from jax.experimental import pallas as pl
from jax.experimental.pallas import tpu as pltpu

LANE = 128      # feature dims are zero-padded to this (vreg lane width)
SUBLANE = 8     # row dims are zero-padded to this (vreg sublane width)
NEG_INF = -1e9  # finite "minus infinity" so masked softmax rows never NaN


def _round_up(x, m):
    return ((x + m - 1) // m) * m


# ----------------------------- Pallas kernels ------------------------------ #
# Kernel 1: encoder prep — runs ONCE per forward (hoisted out of the decode loop).
#   h  = relu(x @ W_enc + b_enc)
#   kv = h @ [W_k | W_v]           (single fused (D, 2D) matmul)
# Row-gridded with "parallel" semantics so megacore can shard the row blocks.

def _encoder_kv_kernel(x_ref, we_ref, be_ref, wkv_ref, kv_ref):
    h = jnp.dot(x_ref[...].astype(jnp.bfloat16), we_ref[...],
                preferred_element_type=jnp.float32) + be_ref[...]
    h = jnp.maximum(h, 0.0)
    kv_ref[...] = jnp.dot(h.astype(jnp.bfloat16), wkv_ref[...],
                          preferred_element_type=jnp.float32)


def encoder_kv(x, w_enc, b_enc, w_kv, row_block=SUBLANE):
    rp, dp = x.shape
    two_dp = w_kv.shape[1]
    return pl.pallas_call(
        _encoder_kv_kernel,
        out_shape=jax.ShapeDtypeStruct((rp, two_dp), jnp.float32),
        grid=(rp // row_block,),
        in_specs=[pl.BlockSpec((row_block, dp), lambda i: (i, 0)),
                  pl.BlockSpec((dp, dp), lambda i: (0, 0)),
                  pl.BlockSpec((1, dp), lambda i: (0, 0)),
                  pl.BlockSpec((dp, two_dp), lambda i: (0, 0))],
        out_specs=pl.BlockSpec((row_block, two_dp), lambda i: (i, 0)),
        compiler_params=pltpu.CompilerParams(dimension_semantics=("parallel",)),
    )(x, w_enc, b_enc, w_kv)


# Kernel 2: one fully fused greedy decode step (single query token per batch row).
#   q      = x @ W_q
#   attn   = softmax(q K^T * scale + bias) V        (bias = block-diag batch mask
#                                                     + input padding mask, in f32)
#   h      = relu((x + attn) @ W_o + b_o)
#   logits = h @ W_head + b_head  ;  scores = softmax(logits)
#   qenc|qdec = scores @ [E_enc | E_dec]            (single (V, 2D) matmul)
# All matmul operands bf16 with f32 accumulation; epilogues f32.
# TODO(synk): weights are re-streamed HBM->VMEM each step; keeping them VMEM-resident
# across steps would require putting the whole while-loop inside one pallas_call.

def _decode_step_kernel(x_ref, kt_ref, v_ref, bias_ref, wq_ref, wo_ref, bo_ref,
                        wh_ref, bh_ref, emb_ref,
                        logit_ref, score_ref, qcat_ref, h_ref, *, scale):
    x = x_ref[...]                                                      # (Bp, Dp) f32
    q = jnp.dot(x.astype(jnp.bfloat16), wq_ref[...],
                preferred_element_type=jnp.float32)                     # (Bp, Dp)
    s = jnp.dot(q.astype(jnp.bfloat16), kt_ref[...],
                preferred_element_type=jnp.float32) * scale             # (Bp, R)
    s = s + bias_ref[...]                                               # mask in f32
    s = s - jnp.max(s, axis=-1, keepdims=True)
    p = jnp.exp(s)
    p = p * pl.reciprocal(jnp.sum(p, axis=-1, keepdims=True), approx=True)
    ctx = jnp.dot(p.astype(jnp.bfloat16), v_ref[...],
                  preferred_element_type=jnp.float32)                   # (Bp, Dp)
    h = jnp.dot((x + ctx).astype(jnp.bfloat16), wo_ref[...],
                preferred_element_type=jnp.float32) + bo_ref[...]
    h = jnp.maximum(h, 0.0)
    logits = jnp.dot(h.astype(jnp.bfloat16), wh_ref[...],
                     preferred_element_type=jnp.float32) + bh_ref[...]  # (Bp, Vp)
    e = jnp.exp(logits - jnp.max(logits, axis=-1, keepdims=True))
    sc = e * pl.reciprocal(jnp.sum(e, axis=-1, keepdims=True), approx=True)
    logit_ref[...] = logits
    score_ref[...] = sc
    qcat_ref[...] = jnp.dot(sc.astype(jnp.bfloat16), emb_ref[...],
                            preferred_element_type=jnp.float32)         # (Bp, 2Dp)
    h_ref[...] = h


def decode_step(x, kt, v, bias, wq, wo, bo, wh, bh, emb, *, scale):
    bp, dp = x.shape
    r = kt.shape[1]
    vp = wh.shape[1]
    two_dp = emb.shape[1]
    out_shapes = (jax.ShapeDtypeStruct((bp, vp), jnp.float32),
                  jax.ShapeDtypeStruct((bp, vp), jnp.float32),
                  jax.ShapeDtypeStruct((bp, two_dp), jnp.float32),
                  jax.ShapeDtypeStruct((bp, dp), jnp.float32))
    return pl.pallas_call(
        functools.partial(_decode_step_kernel, scale=scale),
        out_shape=out_shapes,
        grid=(1,),
        in_specs=[pl.BlockSpec((bp, dp), lambda i: (0, 0)),
                  pl.BlockSpec((dp, r), lambda i: (0, 0)),
                  pl.BlockSpec((r, dp), lambda i: (0, 0)),
                  pl.BlockSpec((bp, r), lambda i: (0, 0)),
                  pl.BlockSpec((dp, dp), lambda i: (0, 0)),
                  pl.BlockSpec((dp, dp), lambda i: (0, 0)),
                  pl.BlockSpec((1, dp), lambda i: (0, 0)),
                  pl.BlockSpec((dp, vp), lambda i: (0, 0)),
                  pl.BlockSpec((1, vp), lambda i: (0, 0)),
                  pl.BlockSpec((vp, two_dp), lambda i: (0, 0))],
        out_specs=(pl.BlockSpec((bp, vp), lambda i: (0, 0)),
                   pl.BlockSpec((bp, vp), lambda i: (0, 0)),
                   pl.BlockSpec((bp, two_dp), lambda i: (0, 0)),
                   pl.BlockSpec((bp, dp), lambda i: (0, 0))),
        compiler_params=pltpu.CompilerParams(dimension_semantics=("arbitrary",)),
    )(x, kt, v, bias, wq, wo, bo, wh, bh, emb)


# ----------------------- jitted autoregressive decode ----------------------- #

@functools.partial(jax.jit, static_argnames=("n_max", "prepend", "pad_id", "eos_id",
                                              "p_eos_fwd", "p_eos_bwd"))
def _autoregressive_decode(params, input_embeds, input_mask_f,
                           init_embeds_enc, init_embeds_dec, init_mask_f,
                           *, n_max, prepend, pad_id, eos_id, p_eos_fwd, p_eos_bwd):
    f32 = jnp.float32
    B, S, D = input_embeds.shape
    V = params["onehot_pad"].shape[0]
    Dp = params["w_q"].shape[0]
    Vp = params["b_head"].shape[1]
    Bp = _round_up(max(B, SUBLANE), SUBLANE)
    total = prepend + n_max
    scale = 1.0 / math.sqrt(D)

    # ---- hoisted encoder + K/V cache (one Pallas call per forward) ----
    R = B * S
    Rp = _round_up(R, SUBLANE)
    x_enc = jnp.zeros((Rp, Dp), f32).at[:R, :D].set(input_embeds.reshape(R, D))
    kv = encoder_kv(x_enc, params["w_enc"], params["b_enc"], params["w_kv"])
    kt = kv[:R, :Dp].T.astype(jnp.bfloat16)               # (Dp, R)
    v2 = kv[:R, Dp:].astype(jnp.bfloat16)                  # (R, Dp)

    # block-diagonal (batch) + padding attention bias, kept in f32
    col = jnp.arange(R)
    same_batch = (col[None, :] // S) == jnp.arange(B)[:, None]          # (B, R)
    valid = jnp.logical_and(same_batch, (input_mask_f.reshape(R) > 0)[None, :])
    attn_bias = jnp.full((Bp, R), NEG_INF, f32).at[:B].set(
        jnp.where(valid, 0.0, NEG_INF).astype(f32))

    # ---- pre-allocated, fixed-shape decode buffers ----
    ids_buf = jnp.full((B, n_max), pad_id, jnp.int32)
    scores_buf = jnp.zeros((B, n_max, V), f32)
    logits_buf = jnp.zeros((B, n_max, V), f32)
    pnoteos_buf = jnp.ones((B, n_max + 1), f32)            # index 0 == p_not_eoss[0]
    emb_enc_buf = jnp.zeros((B, total, D), f32).at[:, :prepend].set(init_embeds_enc)
    emb_dec_buf = jnp.zeros((B, total, D), f32).at[:, :prepend].set(init_embeds_dec)
    mask_buf = jnp.zeros((B, total), f32).at[:, :prepend].set(init_mask_f)
    eos_flags = jnp.zeros((B, 1), jnp.bool_)
    qloss = jnp.zeros((B, 1), f32)
    step0 = jnp.array(0, jnp.int32)

    def att_mask(eos, p_not_eos):
        tm = jnp.logical_not(eos)
        if p_eos_fwd:
            return p_not_eos
        elif p_eos_bwd:
            return tm + p_not_eos - lax.stop_gradient(p_not_eos)
        return tm.astype(f32)

    def cond(state):
        step = state[0]
        eos = state[8]
        return jnp.logical_and(step < n_max, jnp.logical_not(jnp.all(eos)))

    def body(state):
        (step, ids_b, sc_b, lg_b, pne_b, ee_b, ed_b, m_b, eos, ql) = state
        pos = prepend + step
        # last decoder position only (exact for this cross-attention-only decoder)
        x_last = lax.dynamic_slice(ed_b, (0, pos - 1, 0), (B, 1, D))[:, 0]     # (B, D)
        m_last = lax.dynamic_slice(m_b, (0, pos - 1), (B, 1))                  # (B, 1)
        x_in = x_last * m_last
        x_pad = jnp.zeros((Bp, Dp), f32).at[:B, :D].set(x_in)

        logit_p, score_p, qcat_p, h_p = decode_step(
            x_pad, kt, v2, attn_bias,
            params["w_q"], params["w_o"], params["b_o"],
            params["w_head"], params["b_head"], params["emb_cat"], scale=scale)

        logit = logit_p[:B, :V]
        score = score_p[:B, :V]
        qenc = qcat_p[:B, :D]
        qdec = qcat_p[:B, Dp:Dp + D]
        h = h_p[:B, :D]

        ids_new = jnp.argmax(logit, axis=-1).astype(jnp.int32)                 # (B,)
        cur_eos = jnp.equal(ids_new, eos_id)[:, None]                          # (B, 1)
        p_eos = score[:, eos_id][:, None]                                      # (B, 1)
        ql_step = jnp.mean((qenc - h) ** 2, axis=-1, keepdims=True)            # (B, 1)

        ids_b = lax.dynamic_update_slice(ids_b, ids_new[:, None], (0, step))
        sc_b = lax.dynamic_update_slice(sc_b, score[:, None, :], (0, step, 0))
        lg_b = lax.dynamic_update_slice(lg_b, logit[:, None, :], (0, step, 0))

        pne_prev = lax.dynamic_slice(pne_b, (0, step), (B, 1))                 # p_not_eoss[step]
        pne_b = lax.dynamic_update_slice(pne_b, (1.0 - p_eos) * pne_prev, (0, step + 1))

        new_mask_col = att_mask(eos, pne_prev)[:, 0:1].astype(f32)             # pre-update eos
        m_b = lax.dynamic_update_slice(m_b, new_mask_col, (0, pos))

        eos = jnp.logical_or(eos, cur_eos)
        not_eos = jnp.logical_not(eos).astype(f32)
        ql = ql + ql_step * not_eos
        ql = ql * (ql_step * not_eos)          # faithful to the reference bookkeeping

        ee_b = lax.dynamic_update_slice(ee_b, qenc[:, None, :], (0, pos, 0))
        ed_b = lax.dynamic_update_slice(ed_b, qdec[:, None, :], (0, pos, 0))

        return (step + 1, ids_b, sc_b, lg_b, pne_b, ee_b, ed_b, m_b, eos, ql)

    state = (step0, ids_buf, scores_buf, logits_buf, pnoteos_buf,
             emb_enc_buf, emb_dec_buf, mask_buf, eos_flags, qloss)
    state = lax.while_loop(cond, body, state)
    (step, ids_b, sc_b, lg_b, pne_b, ee_b, ed_b, m_b, eos, ql) = state

    # ---- final pad re-masking on the full fixed-shape buffers (host slices later) ----
    onehot_pad = params["onehot_pad"]
    gen_float = m_b[:, prepend:]
    gen_bin = gen_float > 0
    ids_m = (ids_b * gen_bin.astype(jnp.int32)
             + pad_id * jnp.logical_not(gen_bin).astype(jnp.int32))
    scores_m = sc_b * gen_float[..., None] + (1.0 - gen_float)[..., None] * onehot_pad
    not_mask = jnp.logical_not(m_b).astype(f32)[..., None]
    ee_m = ee_b * m_b[..., None] + params["pad_embed_enc"] * not_mask
    ed_m = ed_b * m_b[..., None] + params["pad_embed_dec"] * not_mask

    return dict(step=step, ids=ids_m, scores=scores_m, scores_raw=sc_b, logits=lg_b,
                p_not_eos=pne_b, emb_enc=ee_m, emb_dec=ed_m, out_mask=m_b,
                eos_flag=eos, quantization_loss=ql)


# --------------------- synthetic discretizer & seq2seq ---------------------- #

class SoftmaxDiscretizer:
    """Softmax vector-quantizer with encoder/decoder embedding tables.

    The per-token forward (head matmul + softmax + score-weighted embeddings) is
    fused into `_decode_step_kernel`; this class holds the parameters, the id->embed
    lookups, and the padded bf16 slabs consumed by the kernels.
    """

    def __init__(self, key, vocab_size, hidden):
        k1, k2, k3, k4 = jax.random.split(key, 4)
        self.vocab_size = vocab_size
        self.hidden = hidden
        self.encoder_embedding = 0.3 * jax.random.normal(k1, (vocab_size, hidden), jnp.float32)
        self.decoder_embedding = 0.3 * jax.random.normal(k2, (vocab_size, hidden), jnp.float32)
        self.W_head = 0.5 * jax.random.normal(k3, (hidden, vocab_size), jnp.float32)
        self.b_head = 0.1 * jax.random.normal(k4, (vocab_size,), jnp.float32)

    def encoder_embedding_from_id(self, ids):
        return self.encoder_embedding[jnp.asarray(ids)]

    def decoder_embedding_from_id(self, ids):
        return self.decoder_embedding[jnp.asarray(ids)]

    def padded_slabs(self, d_pad, v_pad):
        D, V = self.hidden, self.vocab_size
        wh = jnp.zeros((d_pad, v_pad), jnp.float32).at[:D, :V].set(self.W_head)
        # padded vocab lanes get a -1e9 bias so softmax/argmax ignore them
        bh = jnp.full((1, v_pad), NEG_INF, jnp.float32).at[0, :V].set(self.b_head)
        enc = jnp.zeros((v_pad, d_pad), jnp.float32).at[:V, :D].set(self.encoder_embedding)
        dec = jnp.zeros((v_pad, d_pad), jnp.float32).at[:V, :D].set(self.decoder_embedding)
        return {"w_head": wh.astype(jnp.bfloat16),
                "b_head": bh,
                "emb_cat": jnp.concatenate([enc, dec], axis=1).astype(jnp.bfloat16)}

    # TODO(synk): standalone (teacher-forced) discretizer forward is not exercised;
    # the greedy path runs entirely through the fused Pallas decode-step kernel.


class CrossAttentionSeq2Seq:
    """Minimal encoder/decoder: encoder MLP + single cross-attention decoder block.

    The encoder MLP and the K/V projections run once per forward via `encoder_kv`;
    the single-query decoder block runs per step inside `_decode_step_kernel`.
    """

    def __init__(self, key, hidden):
        ks = jax.random.split(key, 7)
        s = 1.0 / math.sqrt(hidden)
        self.hidden = hidden
        self.W_enc = s * jax.random.normal(ks[0], (hidden, hidden), jnp.float32)
        self.b_enc = 0.05 * jax.random.normal(ks[1], (hidden,), jnp.float32)
        self.W_q = s * jax.random.normal(ks[2], (hidden, hidden), jnp.float32)
        self.W_k = s * jax.random.normal(ks[3], (hidden, hidden), jnp.float32)
        self.W_v = s * jax.random.normal(ks[4], (hidden, hidden), jnp.float32)
        self.W_o = s * jax.random.normal(ks[5], (hidden, hidden), jnp.float32)
        self.b_o = 0.05 * jax.random.normal(ks[6], (hidden,), jnp.float32)

    def padded_slabs(self, d_pad):
        D = self.hidden

        def padw(w):
            return jnp.zeros((d_pad, d_pad), jnp.float32).at[:D, :D].set(w)

        w_kv = jnp.concatenate([padw(self.W_k), padw(self.W_v)], axis=1)
        return {"w_enc": padw(self.W_enc).astype(jnp.bfloat16),
                "b_enc": jnp.zeros((1, d_pad), jnp.float32).at[0, :D].set(self.b_enc),
                "w_kv": w_kv.astype(jnp.bfloat16),
                "w_q": padw(self.W_q).astype(jnp.bfloat16),
                "w_o": padw(self.W_o).astype(jnp.bfloat16),
                "b_o": jnp.zeros((1, d_pad), jnp.float32).at[0, :D].set(self.b_o)}


# ------------------------------ AutoRegWrapper ------------------------------ #

class AutoRegWrapper:
    """JAX port of the PyTorch AutoRegWrapper forward pass (greedy, non-teacher-forced)."""

    def __init__(self, vector_model, input_discretizer, output_discretizer, config):
        self.config = config
        self.model = vector_model
        self.input_discretizer = input_discretizer
        self.output_discretizer = output_discretizer
        self.max_lengths = config['max_lengths']
        self.control_token_ids = config['control_token_ids']
        self.soft_average = config['soft_average']
        self.hidden_state_key = config.get('hidden_state_key', 'decoder_hidden_states')

        output_prepending_ids = config.get('output_prepending_ids', None)
        output_prepending_embeds_enc = config.get('output_prepending_embeds_enc', None)
        output_prepending_embeds_dec = config.get('output_prepending_embeds_dec', None)
        if output_prepending_ids is None and (output_prepending_embeds_enc is None
                                              or output_prepending_embeds_dec is None):
            raise ValueError('output_prepending_ids nor the embeddings are not provided')
        elif output_prepending_ids is None:
            self.output_prepending_ids = (self.control_token_ids['pad_token_id_y'] *
                                          np.ones(output_prepending_embeds_dec.shape[:2], dtype=np.int64))
            self.output_prepending_embeds_enc = np.asarray(output_prepending_embeds_enc)
            self.output_prepending_embeds_dec = np.asarray(output_prepending_embeds_dec)
        else:
            self.output_prepending_ids = output_prepending_ids
            ids = jnp.asarray(np.array(output_prepending_ids), dtype=jnp.int32)
            self.output_prepending_embeds_enc = np.asarray(
                self.output_discretizer.encoder_embedding_from_id(ids))
            self.output_prepending_embeds_dec = np.asarray(
                self.output_discretizer.decoder_embedding_from_id(ids))

        # Padded, bf16, lane-dense weight slabs built ONCE for the Pallas kernels.
        D = self.model.hidden
        V = self.output_discretizer.vocab_size
        d_pad = _round_up(D, LANE)
        v_pad = _round_up(V, LANE)
        pad_id = self.control_token_ids['output_pad_token_id']
        self._decode_params = {**self.model.padded_slabs(d_pad),
                               **self.output_discretizer.padded_slabs(d_pad, v_pad),
                               "onehot_pad": jax.nn.one_hot(pad_id, V, dtype=jnp.float32),
                               "pad_embed_enc": self.output_discretizer.encoder_embedding[pad_id],
                               "pad_embed_dec": self.output_discretizer.decoder_embedding[pad_id]}

    # ---- forward ---- #
    def forward(self, input_ids=None, input_attention_mask=None, input_embeds_enc=None,
                output_ids=None, output_embeds_enc=None, output_embeds_dec=None,
                output_attention_mask=None, teacher_force_output=False, max_output_length=None):
        if max_output_length is None:
            max_output_length = self.max_lengths['output']
        assert (input_ids is not None) != (input_embeds_enc is not None)

        if input_ids is not None:
            input_embeds_enc = self.input_discretizer.encoder_embedding_from_id(input_ids)
            input_attention_mask = jnp.logical_not(
                jnp.equal(input_ids, self.control_token_ids['input_pad_token_id']))

        if output_ids is not None:
            output_embeds_enc = self.output_discretizer.encoder_embedding_from_id(output_ids)
            output_embeds_dec = self.output_discretizer.decoder_embedding_from_id(output_ids)
            output_attention_mask = jnp.logical_not(
                jnp.equal(output_ids, self.control_token_ids['output_pad_token_id']))
        elif output_embeds_enc is not None:
            output_ids = self.control_token_ids['output_unknown_token_id'] * jnp.ones(
                input_embeds_enc.shape[:2], dtype=jnp.int32)
        else:
            B = input_embeds_enc.shape[0]
            output_ids = jnp.tile(jnp.asarray(np.array(self.output_prepending_ids),
                                              dtype=jnp.int32)[None, :], (B, 1))
            output_embeds_enc = jnp.tile(jnp.asarray(self.output_prepending_embeds_enc)[None],
                                         (B, 1, 1))
            output_embeds_dec = jnp.tile(jnp.asarray(self.output_prepending_embeds_dec)[None],
                                         (B, 1, 1))
            output_attention_mask = jnp.ones(output_embeds_enc.shape[:2], dtype=bool)

        if not teacher_force_output:
            outputs = self._sequential_forward_from_embed(
                self.model, self.output_discretizer,
                input_embeds=input_embeds_enc, input_attention_mask=input_attention_mask,
                output_embeds_enc=output_embeds_enc, output_embeds_dec=output_embeds_dec,
                output_attention_mask=output_attention_mask,
                max_output_length=max_output_length)
        else:
            # TODO(synk): teacher-forced supervised discretizer path is not exercised here.
            raise NotImplementedError("teacher_force_output=True path not implemented")

        return {'id': outputs['id'], 'score': outputs['score'],
                'score_list': outputs['score_list'], 'logit': outputs['logit'],
                'quantized_vector_encoder': outputs['quantized_vector_encoder'],
                'quantized_vector_decoder': outputs['quantized_vector_decoder'],
                'output_attention_mask': outputs['output_attention_mask'],
                'eos_flag': outputs['eos_flag'], 'p_not_eos': outputs['p_not_eos'],
                'quantization_loss': outputs['quantization_loss']}

    # ---- autoregressive loop (single jitted lax.while_loop, one host sync) ---- #
    def _sequential_forward_from_embed(self, model, discretizer, input_embeds,
                                       input_attention_mask, output_embeds_enc,
                                       output_embeds_dec, output_attention_mask,
                                       max_output_length):
        del model, discretizer  # parameters live in the pre-built padded slabs
        pad_id = self.control_token_ids['output_pad_token_id']
        eos_id = self.control_token_ids['output_eos_token_id']
        prepend = output_embeds_enc.shape[1]
        n_max = max_output_length - prepend

        res = _autoregressive_decode(
            self._decode_params,
            jnp.asarray(input_embeds, jnp.float32),
            jnp.asarray(input_attention_mask).astype(jnp.float32),
            jnp.asarray(output_embeds_enc, jnp.float32),
            jnp.asarray(output_embeds_dec, jnp.float32),
            jnp.asarray(output_attention_mask).astype(jnp.float32),
            n_max=n_max, prepend=prepend, pad_id=pad_id, eos_id=eos_id,
            p_eos_fwd=bool(self.soft_average['p_eos_forward']),
            p_eos_bwd=bool(self.soft_average['p_eos_backward']))

        step = int(res["step"])     # the only device->host sync of the whole decode

        ids = res["ids"][:, :step]
        scores = res["scores"][:, :step]
        logits = res["logits"][:, :step]
        scores_list = [res["scores_raw"][:, s:s + 1, :] for s in range(step)]
        p_not_eoss = [res["p_not_eos"][:, s + 1:s + 2] for s in range(step)]
        output_embeds_encs = res["emb_enc"][:, :prepend + step]
        output_embeds_decs = res["emb_dec"][:, :prepend + step]
        output_attention_masks = res["out_mask"][:, :prepend + step]

        return {'id': ids, 'score': scores, 'score_list': scores_list, 'logit': logits,
                'quantized_vector_encoder': output_embeds_encs,
                'quantized_vector_decoder': output_embeds_decs,
                'quantization_loss': res["quantization_loss"],
                'output_attention_mask': output_attention_masks,
                'eos_flag': res["eos_flag"], 'p_not_eos': p_not_eoss}

    def attention_mask(self, eos_flags, p_not_eos):
        true_attention_mask = jnp.logical_not(eos_flags)
        if self.config['soft_average']['p_eos_forward']:
            return p_not_eos
        elif self.config['soft_average']['p_eos_backward']:
            return true_attention_mask + p_not_eos - jax.lax.stop_gradient(p_not_eos)
        else:
            return true_attention_mask


# ----------------------------------- main ----------------------------------- #

if __name__ == "__main__":
    B, S_IN, D, V = 2, 8, 32, 16
    MAX_OUT = 6

    key = jax.random.PRNGKey(0)
    k_model, k_in_disc, k_out_disc, k_ids = jax.random.split(key, 4)

    model = CrossAttentionSeq2Seq(k_model, hidden=D)
    input_discretizer = SoftmaxDiscretizer(k_in_disc, vocab_size=V, hidden=D)
    output_discretizer = SoftmaxDiscretizer(k_out_disc, vocab_size=V, hidden=D)

    config = {
        'max_lengths': {'output': MAX_OUT},
        'control_token_ids': {'input_pad_token_id': 0, 'output_pad_token_id': 0,
                              'output_eos_token_id': 1, 'output_unknown_token_id': 2,
                              'pad_token_id_y': 0},
        'soft_average': {'word_embeds_with_scores_forward': True,
                         'p_eos_forward': False, 'p_eos_backward': False},
        'use_last_step_states': False,
        'use_past_key_values': False,
        'device': None,
        'output_prepending_ids': [3, 4],
        'hidden_state_key': 'decoder_hidden_states',
    }

    wrapper = AutoRegWrapper(model, input_discretizer, output_discretizer, config)

    input_ids = jax.random.randint(k_ids, (B, S_IN), 1, V, dtype=jnp.int32)
    input_ids = input_ids.at[1, -2:].set(0)   # some padding to exercise the input mask

    outputs = wrapper.forward(input_ids=input_ids)
    jax.tree_util.tree_map(jax.block_until_ready, outputs)

    # sanity checks on shapes
    n_gen = outputs['id'].shape[1]
    prepend_len = len(config['output_prepending_ids'])
    assert 1 <= n_gen <= MAX_OUT - prepend_len
    assert outputs['id'].shape == (B, n_gen)
    assert outputs['score'].shape == (B, n_gen, V)
    assert outputs['logit'].shape == (B, n_gen, V)
    assert outputs['quantized_vector_encoder'].shape == (B, n_gen + prepend_len, D)
    assert outputs['quantized_vector_decoder'].shape == (B, n_gen + prepend_len, D)
    assert outputs['output_attention_mask'].shape == (B, n_gen + prepend_len)
    assert outputs['quantization_loss'].shape == (B, 1)
    assert len(outputs['score_list']) == n_gen and len(outputs['p_not_eos']) == n_gen
    print("KERNEL_OK")
</pallas_src>

<mosaic_0001>
module attributes {stable_mosaic.version = 11 : i64} {
  func.func @_encoder_kv_kernel(%arg0: i32, %arg1: memref<8x128xf32, #tpu.memory_space<vmem>>, %arg2: memref<128x128xbf16, #tpu.memory_space<vmem>>, %arg3: memref<1x128xf32, #tpu.memory_space<vmem>>, %arg4: memref<128x256xbf16, #tpu.memory_space<vmem>>, %arg5: memref<8x256xf32, #tpu.memory_space<vmem>>) attributes {dimension_semantics = [#tpu.dimension_semantics<parallel>], iteration_bounds = array<i64: 2>, scalar_prefetch = 0 : i64, scratch_operands = 0 : i64, tpu.core_type = #tpu.core_type<tc>, window_params = [{transform_indices = @transform_0, window_bounds = array<i64: 8, 128>}, {pipeline_mode = #tpu.pipeline_mode<synchronous>, transform_indices = @transform_1, window_bounds = array<i64: 128, 128>}, {pipeline_mode = #tpu.pipeline_mode<synchronous>, transform_indices = @transform_2, window_bounds = array<i64: 1, 128>}, {pipeline_mode = #tpu.pipeline_mode<synchronous>, transform_indices = @transform_3, window_bounds = array<i64: 128, 256>}, {transform_indices = @transform_4, window_bounds = array<i64: 8, 256>}]} {
    %c0 = arith.constant 0 : index
    %c0_0 = arith.constant 0 : index
    %0 = vector.load %arg1[%c0, %c0_0] : memref<8x128xf32, #tpu.memory_space<vmem>>, vector<8x128xf32>
    %1 = arith.truncf %0 : vector<8x128xf32> to vector<8x128xbf16>
    %c0_1 = arith.constant 0 : index
    %c0_2 = arith.constant 0 : index
    %2 = vector.load %arg2[%c0_1, %c0_2] : memref<128x128xbf16, #tpu.memory_space<vmem>>, vector<128x128xbf16>
    %cst = arith.constant dense<0.000000e+00> : vector<8x128xf32>
    %3 = tpu.matmul %1, %2, %cst {dimension_numbers = #tpu.dot_dimension_numbers<[1], [0], [0], [1], [0, 0, 1, 1], [], []>} : vector<8x128xbf16>, vector<128x128xbf16>, vector<8x128xf32> -> vector<8x128xf32>
    %c0_3 = arith.constant 0 : index
    %c0_4 = arith.constant 0 : index
    %4 = vector.load %arg3[%c0_3, %c0_4] : memref<1x128xf32, #tpu.memory_space<vmem>>, vector<1x128xf32>
    %5 = vector.broadcast %4 : vector<1x128xf32> to vector<8x128xf32>
    %6 = arith.addf %3, %5 : vector<8x128xf32>
    %cst_5 = arith.constant 0.000000e+00 : f32
    %7 = vector.broadcast %cst_5 : f32 to vector<8x128xf32>
    %8 = arith.maximumf %6, %7 : vector<8x128xf32>
    %9 = arith.truncf %8 : vector<8x128xf32> to vector<8x128xbf16>
    %c0_6 = arith.constant 0 : index
    %c0_7 = arith.constant 0 : index
    %10 = vector.load %arg4[%c0_6, %c0_7] : memref<128x256xbf16, #tpu.memory_space<vmem>>, vector<128x256xbf16>
    %cst_8 = arith.constant dense<0.000000e+00> : vector<8x256xf32>
    %11 = tpu.matmul %9, %10, %cst_8 {dimension_numbers = #tpu.dot_dimension_numbers<[1], [0], [0], [1], [0, 0, 1, 1], [], []>} : vector<8x128xbf16>, vector<128x256xbf16>, vector<8x256xf32> -> vector<8x256xf32>
    %c0_9 = arith.constant 0 : index
    %c0_10 = arith.constant 0 : index
    %12 = vector.load %arg5[%c0_9, %c0_10] : memref<8x256xf32, #tpu.memory_space<vmem>>, vector<8x256xf32>
    tpu.vector_store %arg5[%c0_9, %c0_10], %11 {strides = array<i32>} : memref<8x256xf32, #tpu.memory_space<vmem>>, vector<8x256xf32>,
    return
  }
  func.func @transform_0(%arg0: i32) -> (i32, i32) {
    %c0_i32 = arith.constant 0 : i32
    %c0_i32_0 = arith.constant 0 : i32
    return %arg0, %c0_i32 : i32, i32
  }
  func.func @transform_1(%arg0: i32) -> (i32, i32) {
    %c0_i32 = arith.constant 0 : i32
    %c0_i32_0 = arith.constant 0 : i32
    %c0_i32_1 = arith.constant 0 : i32
    return %c0_i32, %c0_i32_0 : i32, i32
  }
  func.func @transform_2(%arg0: i32) -> (i32, i32) {
    %c0_i32 = arith.constant 0 : i32
    %c0_i32_0 = arith.constant 0 : i32
    %c0_i32_1 = arith.constant 0 : i32
    return %c0_i32, %c0_i32_0 : i32, i32
  }
  func.func @transform_3(%arg0: i32) -> (i32, i32) {
    %c0_i32 = arith.constant 0 : i32
    %c0_i32_0 = arith.constant 0 : i32
    %c0_i32_1 = arith.constant 0 : i32
    return %c0_i32, %c0_i32_0 : i32, i32
  }
  func.func @transform_4(%arg0: i32) -> (i32, i32) {
    %c0_i32 = arith.constant 0 : i32
    %c0_i32_0 = arith.constant 0 : i32
    return %arg0, %c0_i32 : i32, i32
  }
}

module attributes {stable_mosaic.version = 11 : i64} {
  func.func @_decode_step_kernel(%arg0: i32, %arg1: memref<8x128xf32, #tpu.memory_space<vmem>>, %arg2: memref<128x16xbf16, #tpu.memory_space<vmem>>, %arg3: memref<16x128xbf16, #tpu.memory_space<vmem>>, %arg4: memref<8x16xf32, #tpu.memory_space<vmem>>, %arg5: memref<128x128xbf16, #tpu.memory_space<vmem>>, %arg6: memref<128x128xbf16, #tpu.memory_space<vmem>>, %arg7: memref<1x128xf32, #tpu.memory_space<vmem>>, %arg8: memref<128x128xbf16, #tpu.memory_space<vmem>>, %arg9: memref<1x128xf32, #tpu.memory_space<vmem>>, %arg10: memref<128x256xbf16, #tpu.memory_space<vmem>>, %arg11: memref<8x128xf32, #tpu.memory_space<vmem>>, %arg12: memref<8x128xf32, #tpu.memory_space<vmem>>, %arg13: memref<8x256xf32, #tpu.memory_space<vmem>>, %arg14: memref<8x128xf32, #tpu.memory_space<vmem>>) attributes {dimension_semantics = [#tpu.dimension_semantics<arbitrary>], iteration_bounds = array<i64: 1>, scalar_prefetch = 0 : i64, scratch_operands = 0 : i64, tpu.core_type = #tpu.core_type<tc>, window_params = [{pipeline_mode = #tpu.pipeline_mode<synchronous>, transform_indices = @transform_0, window_bounds = array<i64: 8, 128>}, {pipeline_mode = #tpu.pipeline_mode<synchronous>, transform_indices = @transform_1, window_bounds = array<i64: 128, 16>}, {pipeline_mode = #tpu.pipeline_mode<synchronous>, transform_indices = @transform_2, window_bounds = array<i64: 16, 128>}, {pipeline_mode = #tpu.pipeline_mode<synchronous>, transform_indices = @transform_3, window_bounds = array<i64: 8, 16>}, {pipeline_mode = #tpu.pipeline_mode<synchronous>, transform_indices = @transform_4, window_bounds = array<i64: 128, 128>}, {pipeline_mode = #tpu.pipeline_mode<synchronous>, transform_indices = @transform_5, window_bounds = array<i64: 128, 128>}, {pipeline_mode = #tpu.pipeline_mode<synchronous>, transform_indices = @transform_6, window_bounds = array<i64: 1, 128>}, {pipeline_mode = #tpu.pipeline_mode<synchronous>, transform_indices = @transform_7, window_bounds = array<i64: 128, 128>}, {pipeline_mode = #tpu.pipeline_mode<synchronous>, transform_indices = @transform_8, window_bounds = array<i64: 1, 128>}, {pipeline_mode = #tpu.pipeline_mode<synchronous>, transform_indices = @transform_9, window_bounds = array<i64: 128, 256>}, {pipeline_mode = #tpu.pipeline_mode<synchronous>, transform_indices = @transform_10, window_bounds = array<i64: 8, 128>}, {pipeline_mode = #tpu.pipeline_mode<synchronous>, transform_indices = @transform_11, window_bounds = array<i64: 8, 128>}, {pipeline_mode = #tpu.pipeline_mode<synchronous>, transform_indices = @transform_12, window_bounds = array<i64: 8, 256>}, {pipeline_mode = #tpu.pipeline_mode<synchronous>, transform_indices = @transform_13, window_bounds = array<i64: 8, 128>}]} {
    %c0 = arith.constant 0 : index
    %c0_0 = arith.constant 0 : index
    %0 = vector.load %arg1[%c0, %c0_0] : memref<8x128xf32, #tpu.memory_space<vmem>>, vector<8x128xf32>
    %1 = arith.truncf %0 : vector<8x128xf32> to vector<8x128xbf16>
    %c0_1 = arith.constant 0 : index
    %c0_2 = arith.constant 0 : index
    %2 = vector.load %arg5[%c0_1, %c0_2] : memref<128x128xbf16, #tpu.memory_space<vmem>>, vector<128x128xbf16>
    %cst = arith.constant dense<0.000000e+00> : vector<8x128xf32>
    %3 = tpu.matmul %1, %2, %cst {dimension_numbers = #tpu.dot_dimension_numbers<[1], [0], [0], [1], [0, 0, 1, 1], [], []>} : vector<8x128xbf16>, vector<128x128xbf16>, vector<8x128xf32> -> vector<8x128xf32>
    %4 = arith.truncf %3 : vector<8x128xf32> to vector<8x128xbf16>
    %c0_3 = arith.constant 0 : index
    %c0_4 = arith.constant 0 : index
    %5 = vector.load %arg2[%c0_3, %c0_4] : memref<128x16xbf16, #tpu.memory_space<vmem>>, vector<128x16xbf16>
    %cst_5 = arith.constant dense<0.000000e+00> : vector<8x16xf32>
    %6 = tpu.matmul %4, %5, %cst_5 {dimension_numbers = #tpu.dot_dimension_numbers<[1], [0], [0], [1], [0, 0, 1, 1], [], []>} : vector<8x128xbf16>, vector<128x16xbf16>, vector<8x16xf32> -> vector<8x16xf32>
    %cst_6 = arith.constant 0.176776692 : f32
    %7 = vector.broadcast %cst_6 : f32 to vector<8x16xf32>
    %8 = arith.mulf %6, %7 : vector<8x16xf32>
    %c0_7 = arith.constant 0 : index
    %c0_8 = arith.constant 0 : index
    %9 = vector.load %arg4[%c0_7, %c0_8] : memref<8x16xf32, #tpu.memory_space<vmem>>, vector<8x16xf32>
    %10 = arith.addf %8, %9 : vector<8x16xf32>
    %cst_9 = arith.constant dense<0xFF800000> : vector<8xf32>
    %11 = vector.multi_reduction <maximumf>, %10, %cst_9 [1] : vector<8x16xf32> to vector<8xf32>
    %12 = vector.shape_cast %11 : vector<8xf32> to vector<8x1xf32>
    %13 = vector.broadcast %12 : vector<8x1xf32> to vector<8x16xf32>
    %14 = arith.subf %10, %13 : vector<8x16xf32>
    %15 = math.exp %14 : vector<8x16xf32>
    %cst_10 = arith.constant dense<0.000000e+00> : vector<8xf32>
    %16 = vector.multi_reduction <add>, %15, %cst_10 [1] : vector<8x16xf32> to vector<8xf32>
    %17 = vector.shape_cast %16 : vector<8xf32> to vector<8x1xf32>
    %18 = tpu.reciprocal %17 {approx = true} : vector<8x1xf32> -> vector<8x1xf32>
    %19 = vector.broadcast %18 : vector<8x1xf32> to vector<8x16xf32>
    %20 = arith.mulf %15, %19 : vector<8x16xf32>
    %21 = arith.truncf %20 : vector<8x16xf32> to vector<8x16xbf16>
    %c0_11 = arith.constant 0 : index
    %c0_12 = arith.constant 0 : index
    %22 = vector.load %arg3[%c0_11, %c0_12] : memref<16x128xbf16, #tpu.memory_space<vmem>>, vector<16x128xbf16>
    %cst_13 = arith.constant dense<0.000000e+00> : vector<8x128xf32>
    %23 = tpu.matmul %21, %22, %cst_13 {dimension_numbers = #tpu.dot_dimension_numbers<[1], [0], [0], [1], [0, 0, 1, 1], [], []>} : vector<8x16xbf16>, vector<16x128xbf16>, vector<8x128xf32> -> vector<8x128xf32>
    %24 = arith.addf %0, %23 : vector<8x128xf32>
    %25 = arith.truncf %24 : vector<8x128xf32> to vector<8x128xbf16>
    %c0_14 = arith.constant 0 : index
    %c0_15 = arith.constant 0 : index
    %26 = vector.load %arg6[%c0_14, %c0_15] : memref<128x128xbf16, #tpu.memory_space<vmem>>, vector<128x128xbf16>
    %cst_16 = arith.constant dense<0.000000e+00> : vector<8x128xf32>
    %27 = tpu.matmul %25, %26, %cst_16 {dimension_numbers = #tpu.dot_dimension_numbers<[1], [0], [0], [1], [0, 0, 1, 1], [], []>} : vector<8x128xbf16>, vector<128x128xbf16>, vector<8x128xf32> -> vector<8x128xf32>
    %c0_17 = arith.constant 0 : index
    %c0_18 = arith.constant 0 : index
    %28 = vector.load %arg7[%c0_17, %c0_18] : memref<1x128xf32, #tpu.memory_space<vmem>>, vector<1x128xf32>
    %29 = vector.broadcast %28 : vector<1x128xf32> to vector<8x128xf32>
    %30 = arith.addf %27, %29 : vector<8x128xf32>
    %cst_19 = arith.constant 0.000000e+00 : f32
    %31 = vector.broadcast %cst_19 : f32 to vector<8x128xf32>
    %32 = arith.maximumf %30, %31 : vector<8x128xf32>
    %33 = arith.truncf %32 : vector<8x128xf32> to vector<8x128xbf16>
    %c0_20 = arith.constant 0 : index
    %c0_21 = arith.constant 0 : index
    %34 = vector.load %arg8[%c0_20, %c0_21] : memref<128x128xbf16, #tpu.memory_space<vmem>>, vector<128x128xbf16>
    %cst_22 = arith.constant dense<0.000000e+00> : vector<8x128xf32>
    %35 = tpu.matmul %33, %34, %cst_22 {dimension_numbers = #tpu.dot_dimension_numbers<[1], [0], [0], [1], [0, 0, 1, 1], [], []>} : vector<8x128xbf16>, vector<128x128xbf16>, vector<8x128xf32> -> vector<8x128xf32>
    %c0_23 = arith.constant 0 : index
    %c0_24 = arith.constant 0 : index
    %36 = vector.load %arg9[%c0_23, %c0_24] : memref<1x128xf32, #tpu.memory_space<vmem>>, vector<1x128xf32>
    %37 = vector.broadcast %36 : vector<1x128xf32> to vector<8x128xf32>
    %38 = arith.addf %35, %37 : vector<8x128xf32>
    %cst_25 = arith.constant dense<0xFF800000> : vector<8xf32>
    %39 = vector.multi_reduction <maximumf>, %38, %cst_25 [1] : vector<8x128xf32> to vector<8xf32>
    %40 = vector.shape_cast %39 : vector<8xf32> to vector<8x1xf32>
    %41 = vector.broadcast %40 : vector<8x1xf32> to vector<8x128xf32>
    %42 = arith.subf %38, %41 : vector<8x128xf32>
    %43 = math.exp %42 : vector<8x128xf32>
    %cst_26 = arith.constant dense<0.000000e+00> : vector<8xf32>
    %44 = vector.multi_reduction <add>, %43, %cst_26 [1] : vector<8x128xf32> to vector<8xf32>
    %45 = vector.shape_cast %44 : vector<8xf32> to vector<8x1xf32>
    %46 = tpu.reciprocal %45 {approx = true} : vector<8x1xf32> -> vector<8x1xf32>
    %47 = vector.broadcast %46 : vector<8x1xf32> to vector<8x128xf32>
    %48 = arith.mulf %43, %47 : vector<8x128xf32>
    %c0_27 = arith.constant 0 : index
    %c0_28 = arith.constant 0 : index
    %49 = vector.load %arg11[%c0_27, %c0_28] : memref<8x128xf32, #tpu.memory_space<vmem>>, vector<8x128xf32>
    tpu.vector_store %arg11[%c0_27, %c0_28], %38 {strides = array<i32>} : memref<8x128xf32, #tpu.memory_space<vmem>>, vector<8x128xf32>,
    %c0_29 = arith.constant 0 : index
    %c0_30 = arith.constant 0 : index
    %50 = vector.load %arg12[%c0_29, %c0_30] : memref<8x128xf32, #tpu.memory_space<vmem>>, vector<8x128xf32>
    tpu.vector_store %arg12[%c0_29, %c0_30], %48 {strides = array<i32>} : memref<8x128xf32, #tpu.memory_space<vmem>>, vector<8x128xf32>,
    %51 = arith.truncf %48 : vector<8x128xf32> to vector<8x128xbf16>
    %c0_31 = arith.constant 0 : index
    %c0_32 = arith.constant 0 : index
    %52 = vector.load %arg10[%c0_31, %c0_32] : memref<128x256xbf16, #tpu.memory_space<vmem>>, vector<128x256xbf16>
    %cst_33 = arith.constant dense<0.000000e+00> : vector<8x256xf32>
    %53 = tpu.matmul %51, %52, %cst_33 {dimension_numbers = #tpu.dot_dimension_numbers<[1], [0], [0], [1], [0, 0, 1, 1], [], []>} : vector<8x128xbf16>, vector<128x256xbf16>, vector<8x256xf32> -> vector<8x256xf32>
    %c0_34 = arith.constant 0 : index
    %c0_35 = arith.constant 0 : index
    %54 = vector.load %arg13[%c0_34, %c0_35] : memref<8x256xf32, #tpu.memory_space<vmem>>, vector<8x256xf32>
    tpu.vector_store %arg13[%c0_34, %c0_35], %53 {strides = array<i32>} : memref<8x256xf32, #tpu.memory_space<vmem>>, vector<8x256xf32>,
    %c0_36 = arith.constant 0 : index
    %c0_37 = arith.constant 0 : index
    %55 = vector.load %arg14[%c0_36, %c0_37] : memref<8x128xf32, #tpu.memory_space<vmem>>, vector<8x128xf32>
    tpu.vector_store %arg14[%c0_36, %c0_37], %32 {strides = array<i32>} : memref<8x128xf32, #tpu.memory_space<vmem>>, vector<8x128xf32>,
    return
  }
  func.func @transform_0(%arg0: i32) -> (i32, i32) {
    %c0_i32 = arith.constant 0 : i32
    %c0_i32_0 = arith.constant 0 : i32
    %c0_i32_1 = arith.constant 0 : i32
    return %c0_i32, %c0_i32_0 : i32, i32
  }
  func.func @transform_1(%arg0: i32) -> (i32, i32) {
    %c0_i32 = arith.constant 0 : i32
    %c0_i32_0 = arith.constant 0 : i32
    %c0_i32_1 = arith.constant 0 : i32
    return %c0_i32, %c0_i32_0 : i32, i32
  }
  func.func @transform_2(%arg0: i32) -> (i32, i32) {
    %c0_i32 = arith.constant 0 : i32
    %c0_i32_0 = arith.constant 0 : i32
    %c0_i32_1 = arith.constant 0 : i32
    return %c0_i32, %c0_i32_0 : i32, i32
  }
  func.func @transform_3(%arg0: i32) -> (i32, i32) {
    %c0_i32 = arith.constant 0 : i32
    %c0_i32_0 = arith.constant 0 : i32
    %c0_i32_1 = arith.constant 0 : i32
    return %c0_i32, %c0_i32_0 : i32, i32
  }
  func.func @transform_4(%arg0: i32) -> (i32, i32) {
    %c0_i32 = arith.constant 0 : i32
    %c0_i32_0 = arith.constant 0 : i32
    %c0_i32_1 = arith.constant 0 : i32
    return %c0_i32, %c0_i32_0 : i32, i32
  }
  func.func @transform_5(%arg0: i32) -> (i32, i32) {
    %c0_i32 = arith.constant 0 : i32
    %c0_i32_0 = arith.constant 0 : i32
    %c0_i32_1 = arith.constant 0 : i32
    return %c0_i32, %c0_i32_0 : i32, i32
  }
  func.func @transform_6(%arg0: i32) -> (i32, i32) {
    %c0_i32 = arith.constant 0 : i32
    %c0_i32_0 = arith.constant 0 : i32
    %c0_i32_1 = arith.constant 0 : i32
    return %c0_i32, %c0_i32_0 : i32, i32
  }
  func.func @transform_7(%arg0: i32) -> (i32, i32) {
    %c0_i32 = arith.constant 0 : i32
    %c0_i32_0 = arith.constant 0 : i32
    %c0_i32_1 = arith.constant 0 : i32
    return %c0_i32, %c0_i32_0 : i32, i32
  }
  func.func @transform_8(%arg0: i32) -> (i32, i32) {
    %c0_i32 = arith.constant 0 : i32
    %c0_i32_0 = arith.constant 0 : i32
    %c0_i32_1 = arith.constant 0 : i32
    return %c0_i32, %c0_i32_0 : i32, i32
  }
  func.func @transform_9(%arg0: i32) -> (i32, i32) {
    %c0_i32 = arith.constant 0 : i32
    %c0_i32_0 = arith.constant 0 : i32
    %c0_i32_1 = arith.constant 0 : i32
    return %c0_i32, %c0_i32_0 : i32, i32
  }
  func.func @transform_10(%arg0: i32) -> (i32, i32) {
    %c0_i32 = arith.constant 0 : i32
    %c0_i32_0 = arith.constant 0 : i32
    %c0_i32_1 = arith.constant 0 : i32
    return %c0_i32, %c0_i32_0 : i32, i32
  }
  func.func @transform_11(%arg0: i32) -> (i32, i32) {
    %c0_i32 = arith.constant 0 : i32
    %c0_i32_0 = arith.constant 0 : i32
    %c0_i32_1 = arith.constant 0 : i32
    return %c0_i32, %c0_i32_0 : i32, i32
  }
  func.func @transform_12(%arg0: i32) -> (i32, i32) {
    %c0_i32 = arith.constant 0 : i32
    %c0_i32_0 = arith.constant 0 : i32
    %c0_i32_1 = arith.constant 0 : i32
    return %c0_i32, %c0_i32_0 : i32, i32
  }
  func.func @transform_13(%arg0: i32) -> (i32, i32) {
    %c0_i32 = arith.constant 0 : i32
    %c0_i32_0 = arith.constant 0 : i32
    %c0_i32_1 = arith.constant 0 : i32
    return %c0_i32, %c0_i32_0 : i32, i32
  }
}

</mosaic_0001>

<llo_original>
// kernel: _autoregressive_decode.1
$region0: #{_autoregressive_decode.1}
  #allocation0 [shape = 'u32[]', space=smem, size = 0x4, offset = 0x4, fixed_abs, tag = 'smem constant byte address 0x4 - core index']
  #allocation1 [shape = 'u32[144,128]{1,0:T(1,128)}', space=vmem, size = 0x12000, scoped, tag = 'internal scratch']
  %s0 = inlined_call_operand.vmem [shape: f32[16,128], index: 0, kind: input, shape index: {}]
  %s1 = inlined_call_operand.hbm [shape: bf16[128,128], index: 1, kind: input, shape index: {}]
  %s2 = inlined_call_operand.vmem [shape: f32[1,128], index: 2, kind: input, shape index: {}]
  %s3 = inlined_call_operand.vmem [shape: bf16[128,256], index: 3, kind: input, shape index: {}]
  %s4 = inlined_call_operand.vmem [shape: f32[16,256], index: 4, kind: output, shape index: {}]
  %s5 = sld [smem:[#allocation0]]
  $region53: #{_autoregressive_decode.1} parent=0
    _
  %s7 = ssub.s32 1, %s5
  %s8 = scalar_select 0, %s7, %s5
  $region1: #{_autoregressive_decode.1} parent=0
    #allocation2 [shape = 'u8[32768]{0}', space=vmem, size = 0x8000, scoped, tag = 'input window, operand 1, single buffered']
    #allocation3 [shape = 's32[2]{0}', space=sflag, size = 0x8, scoped, tag = 'scoped memory for _autoregressive_decode.1']
    %9 = vsyncpa [#allocation3], 0
    loop: start=0, step=1, limit=4
    $region2: #{_autoregressive_decode.1} parent=1 // loop_pre_header
      _
    $region3: #{_autoregressive_decode.1} parent=1 // loop_header
      %s11 = sphi 0, %s15
      %p12 = scmp.ge.s32.totalorder %s11, 4
      %s21 = sphi 0, %s23
      %s24 = sphi 0, %s21
      %s25 = sphi 0, %s24
      %s41 = sphi 0, %s25
      %s45 = sphi 0, %s45
      %s47 = sphi 0, %s45
      %s48 = sphi 0, %s47
      %s62 = sphi 0, %s48
      %s66 = sphi 0, %s66
      %s68 = sphi 0, %s66
      %s69 = sphi 0, %s68
      %s83 = sphi 0, %s69
      %s87 = sphi 0, %s87
      %s89 = sphi 0, %s87
      %s90 = sphi 0, %s89
      %s104 = sphi 0, %s90
      %s110 = sphi 0, %s112
      %s113 = sphi 0, %s110
      %s114 = sphi 0, %s113
      %s130 = sphi 0, %s114
    $region4: #{_autoregressive_decode.1} parent=1 // loop_header_branch
      %14 = sbr.rel (%p12) target = $region8
    $region5: #{_autoregressive_decode.1} parent=1 // loop_body
      %s16 = ssub.s32 %s11, 1
      %s17 = ssub.s32 %s11, 2
      %s18 = sadd.s32 %s11, 1
      %s19 = ssub.s32 %s11, %s18
      %p20 = scmp.eq.s32.totalorder %s19, 0
      %s22 = sadd.s32 %s21, 1
      %s23 = scalar_select %p20, %s21, %s22
      %p26 = pneg %p20
      %p27 = scmp.eq.s32.totalorder %s11, 1
      %p28 = por %p26, %p27
      %p29 = scmp.ne.s32.totalorder %s21, %s24
      %p30 = scmp.eq.s32.totalorder %s11, 0
      %p31 = por %p29, %p30
      %p32 = scmp.ne.s32.totalorder %s21, %s24
      %p33 = scmp.eq.s32.totalorder %s16, 1
      %p34 = por %p32, %p33
      %p35 = scmp.ne.s32.totalorder %s24, %s25
      %p36 = scmp.eq.s32.totalorder %s16, 0
      %p37 = por %p35, %p36
      %p38 = scmp.ne.s32.totalorder %s24, %s25
      %p39 = scmp.eq.s32.totalorder %s17, 1
      %p40 = por %p38, %p39
      %p42 = scmp.ne.s32.totalorder %s25, %s41
      %p43 = scmp.eq.s32.totalorder %s17, 0
      %p44 = por %p42, %p43
      %s46 = sadd.s32 %s45, 1
      %p49 = scmp.eq.s32.totalorder %s11, 1
      %p50 = scmp.ne.s32.totalorder %s45, %s47
      %p51 = scmp.eq.s32.totalorder %s11, 0
      %p52 = por %p50, %p51
      %p53 = scmp.ne.s32.totalorder %s45, %s47
      %p54 = scmp.eq.s32.totalorder %s16, 1
      %p55 = por %p53, %p54
      %p56 = scmp.ne.s32.totalorder %s47, %s48
      %p57 = scmp.eq.s32.totalorder %s16, 0
      %p58 = por %p56, %p57
      %p59 = scmp.ne.s32.totalorder %s47, %s48
      %p60 = scmp.eq.s32.totalorder %s17, 1
      %p61 = por %p59, %p60
      %p63 = scmp.ne.s32.totalorder %s48, %s62
      %p64 = scmp.eq.s32.totalorder %s17, 0
      %p65 = por %p63, %p64
      %s67 = sadd.s32 %s66, 1
      %p70 = scmp.eq.s32.totalorder %s11, 1
      %p71 = scmp.ne.s32.totalorder %s66, %s68
      %p72 = scmp.eq.s32.totalorder %s11, 0
      %p73 = por %p71, %p72
      %p74 = scmp.ne.s32.totalorder %s66, %s68
      %p75 = scmp.eq.s32.totalorder %s16, 1
      %p76 = por %p74, %p75
      %p77 = scmp.ne.s32.totalorder %s68, %s69
      %p78 = scmp.eq.s32.totalorder %s16, 0
      %p79 = por %p77, %p78
      %p80 = scmp.ne.s32.totalorder %s68, %s69
      %p81 = scmp.eq.s32.totalorder %s17, 1
      %p82 = por %p80, %p81
      %p84 = scmp.ne.s32.totalorder %s69, %s83
      %p85 = scmp.eq.s32.totalorder %s17, 0
      %p86 = por %p84, %p85
      %s88 = sadd.s32 %s87, 1
      %p91 = scmp.eq.s32.totalorder %s11, 1
      %p92 = scmp.ne.s32.totalorder %s87, %s89
      %p93 = scmp.eq.s32.totalorder %s11, 0
      %p94 = por %p92, %p93
      %p95 = scmp.ne.s32.totalorder %s87, %s89
      %p96 = scmp.eq.s32.totalorder %s16, 1
      %p97 = por %p95, %p96
      %p98 = scmp.ne.s32.totalorder %s89, %s90
      %p99 = scmp.eq.s32.totalorder %s16, 0
      %p100 = por %p98, %p99
      %p101 = scmp.ne.s32.totalorder %s89, %s90
      %p102 = scmp.eq.s32.totalorder %s17, 1
      %p103 = por %p101, %p102
      %p105 = scmp.ne.s32.totalorder %s90, %s104
      %p106 = scmp.eq.s32.totalorder %s17, 0
      %p107 = por %p105, %p106
      %s108 = ssub.s32 %s11, %s18
      %p109 = scmp.eq.s32.totalorder %s108, 0
      %s111 = sadd.s32 %s110, 1
      %s112 = scalar_select %p109, %s110, %s111
      %p115 = pneg %p109
      %p116 = scmp.eq.s32.totalorder %s11, 1
      %p117 = por %p115, %p116
      %p118 = scmp.ne.s32.totalorder %s110, %s113
      %p119 = scmp.eq.s32.totalorder %s11, 0
      %p120 = por %p118, %p119
      %p121 = scmp.ne.s32.totalorder %s110, %s113
      %p122 = scmp.eq.s32.totalorder %s16, 1
      %p123 = por %p121, %p122
      %p124 = scmp.ne.s32.totalorder %s113, %s114
      %p125 = scmp.eq.s32.totalorder %s16, 0
      %p126 = por %p124, %p125
      %p127 = scmp.ne.s32.totalorder %s113, %s114
      %p128 = scmp.eq.s32.totalorder %s17, 1
      %p129 = por %p127, %p128
      %p131 = scmp.ne.s32.totalorder %s114, %s130
      %p132 = scmp.eq.s32.totalorder %s17, 0
      %p133 = por %p131, %p132
      %p134 = scmp.le.s32.totalorder 1, %s11
      %p135 = scmp.lt.s32.totalorder %s11, 3
      %p136 = pnand %p134, %p135
      %p137 = pneg %p136
      // Predicated region
      $region9: #{_autoregressive_decode.1} parent=5 // pred_check
        _
      $region10: #{_autoregressive_decode.1} parent=5 // pred_check_branch
        %139 = sbr.rel (%p136) target = $region12
      $region11: #{_autoregressive_decode.1} parent=5 // pred_region
        %s140 = ssub.s32 %s11, 1
        // Predicated region
        $region13: #{_autoregressive_decode.1} parent=11 // pred_check
          %p141 = pneg %p58
        $region14: #{_autoregressive_decode.1} parent=11 // pred_check_branch
          %143 = sbr.rel (%p141) target = $region16
        $region15: #{_autoregressive_decode.1} parent=11 // pred_region
          %s145 = ssub.s32 1024, 1024
          %146 = vsyncadd [#allocation3], %s145
          %s147 = sshll.u32 [#allocation2], 4
          %s148 = int_to_ptr.vmem [resolvable:$true] %s147
          %153 = dma.hbm_to_vmem [thread:$0]  %s1, 1024, %s148, [#allocation3], 64, 64, 4
        $region16: #{_autoregressive_decode.1} parent=11 // pred_fallthru
          _
        // Predicated region
        $region17: #{_autoregressive_decode.1} parent=11 // pred_check
          %p154 = pneg %p79
        $region18: #{_autoregressive_decode.1} parent=11 // pred_check_branch
          %156 = sbr.rel (%p154) target = $region20
        $region19: #{_autoregressive_decode.1} parent=11 // pred_region
          _
        $region20: #{_autoregressive_decode.1} parent=11 // pred_fallthru
          _
        // Predicated region
        $region21: #{_autoregressive_decode.1} parent=11 // pred_check
          %p157 = pneg %p100
        $region22: #{_autoregressive_decode.1} parent=11 // pred_check_branch
          %159 = sbr.rel (%p157) target = $region24
        $region23: #{_autoregressive_decode.1} parent=11 // pred_region
          _
        $region24: #{_autoregressive_decode.1} parent=11 // pred_fallthru
          _
      $region12: #{_autoregressive_decode.1} parent=5 // pred_fallthru
        _
      %p160 = scmp.lt.s32.totalorder %s11, 2
      // Predicated region
      $region25: #{_autoregressive_decode.1} parent=5 // pred_check
        %p161 = pneg %p160
      $region26: #{_autoregressive_decode.1} parent=5 // pred_check_branch
        %163 = sbr.rel (%p161) target = $region28
      $region27: #{_autoregressive_decode.1} parent=5 // pred_region
        // Predicated region
        $region29: #{_autoregressive_decode.1} parent=27 // pred_check
          %p164 = pneg %p31
        $region30: #{_autoregressive_decode.1} parent=27 // pred_check_branch
          %166 = sbr.rel (%p164) target = $region32
        $region31: #{_autoregressive_decode.1} parent=27 // pred_region
          %p167 = scmp.lt.s32.totalorder %s11, 1
          %s168 = scalar_select %p167, %s11, 1
          %s169 = smul.addr %s168, 8
          %s170 = scalar_lea.vmem %s0, %s169
        $region32: #{_autoregressive_decode.1} parent=27 // pred_fallthru
          _
      $region28: #{_autoregressive_decode.1} parent=5 // pred_fallthru
        _
      %p171 = scmp.le.s32.totalorder 1, %s11
      %p172 = scmp.lt.s32.totalorder %s11, 3
      %p173 = pnand %p171, %p172
      %p174 = pneg %p173
      // Predicated region
      $region33: #{_autoregressive_decode.1} parent=5 // pred_check
        _
      $region34: #{_autoregressive_decode.1} parent=5 // pred_check_branch
        %176 = sbr.rel (%p173) target = $region36
      $region35: #{_autoregressive_decode.1} parent=5 // pred_region
        %s177 = ssub.s32 %s11, 1
        // Predicated region
        $region37: #{_autoregressive_decode.1} parent=35 // pred_check
          %p178 = pneg %p58
        $region38: #{_autoregressive_decode.1} parent=35 // pred_check_branch
          %180 = sbr.rel (%p178) target = $region40
        $region39: #{_autoregressive_decode.1} parent=35 // pred_region
          %181 = dma.done [#allocation3], 1024
        $region40: #{_autoregressive_decode.1} parent=35 // pred_fallthru
          _
        %p182 = scmp.lt.s32.totalorder %s16, 1
        %s183 = scalar_select %p182, %s16, 1
        %s184 = smul.addr %s183, 8
        %s185 = scalar_lea.vmem %s0, %s184
        %p186 = pneg %p37
        %p187 = pneg %p34
        %p188 = pneg %p58
        %p189 = pneg %p55
        %p190 = pneg %p79
        %p191 = pneg %p76
        %p192 = pneg %p100
        %p193 = pneg %p97
        %p194 = pneg %p126
        %p195 = pneg %p123
        %p196 = scmp.lt.s32.totalorder %s16, 1
        %s197 = scalar_select %p196, %s16, 1
        %s198 = smul.addr %s197, 2
        %s199 = smul.addr %s198, 8
        %s200 = scalar_lea.vmem %s4, %s199
        %p201 = scmp.lt.s32.totalorder %s16, 1
        %s202 = scalar_select %p201, %s16, 1
        %s203 = smul.addr %s202, 8
        %s204 = scalar_lea.vmem %s0, %s203
        %p205 = scmp.lt.s32.totalorder %s16, 1
        %s206 = scalar_select %p205, %s16, 1
        %s207 = smul.addr %s206, 2
        %s208 = smul.addr %s207, 8
        %s209 = scalar_lea.vmem %s4, %s208
        %v211 = vld [vmem:[%s204] sm:$0xff]
        %v212 = vpack.c.bf16 %v211, %v211
        %v213 = vld [vmem:[#allocation2] sm:$0xf]
        %v214 = vld [vmem:[#allocation2 + $0x4] sm:$0xf]
        %v215 = vld [vmem:[#allocation2 + $0x8] sm:$0xf]
        %v216 = vld [vmem:[#allocation2 + $0xc] sm:$0xf]
        %v217 = vld [vmem:[#allocation2 + $0x10] sm:$0xf]
        %v218 = vld [vmem:[#allocation2 + $0x14] sm:$0xf]
        %v219 = vld [vmem:[#allocation2 + $0x18] sm:$0xf]
        %v220 = vld [vmem:[#allocation2 + $0x1c] sm:$0xf]
        %v221 = vld [vmem:[#allocation2 + $0x20] sm:$0xf]
        %v222 = vld [vmem:[#allocation2 + $0x24] sm:$0xf]
        %v223 = vld [vmem:[#allocation2 + $0x28] sm:$0xf]
        %v224 = vld [vmem:[#allocation2 + $0x2c] sm:$0xf]
        %v225 = vld [vmem:[#allocation2 + $0x30] sm:$0xf]
        %v226 = vld [vmem:[#allocation2 + $0x34] sm:$0xf]
        %v227 = vld [vmem:[#allocation2 + $0x38] sm:$0xf]
        %v228 = vld [vmem:[#allocation2 + $0x3c] sm:$0xf]
        %v229 = vld [vmem:[%s2] sm:$0x1]
        %v231 = vlaneseq
        %v232 = vshrl.u32 %v231, 7
        %v233 = vsub.s32 0, %v232
        %v234 = vrot.slane %v229, %v233
        %v252 = vunpack.c.l.b16 %v213
        %v253 = vunpack.c.l.b16 %v214
        %v254 = vunpack.c.l.b16 %v215
        %v255 = vunpack.c.l.b16 %v216
        %v256 = vunpack.c.l.b16 %v217
        %v257 = vunpack.c.l.b16 %v218
        %v258 = vunpack.c.l.b16 %v219
        %v259 = vunpack.c.l.b16 %v220
        %v260 = vunpack.c.l.b16 %v221
        %v261 = vunpack.c.l.b16 %v222
        %v262 = vunpack.c.l.b16 %v223
        %v263 = vunpack.c.l.b16 %v224
        %v264 = vunpack.c.l.b16 %v225
        %v265 = vunpack.c.l.b16 %v226
        %v266 = vunpack.c.l.b16 %v227
        %v267 = vunpack.c.l.b16 %v228
        %v268 = vpack.c.b16 %v253, %v252
        %v269 = vpack.c.b16 %v255, %v254
        %v270 = vpack.c.b16 %v257, %v256
        %v271 = vpack.c.b16 %v259, %v258
        %v272 = vpack.c.b16 %v261, %v260
        %v273 = vpack.c.b16 %v263, %v262
        %v274 = vpack.c.b16 %v265, %v264
        %v275 = vpack.c.b16 %v267, %v266
        %284 = vmatprep.subr.bf16.mxu0 0
        %285 = vmatpush1.bf16.msra.mxu0 %v275
        %286 = vmatprep.subr.bf16.mxu0 0
        %287 = vmatpush1.bf16.msra.mxu0 %v274
        %288 = vmatprep.subr.bf16.mxu0 0
        %289 = vmatpush1.bf16.msra.mxu0 %v273
        %290 = vmatprep.subr.bf16.mxu0 0
        %291 = vmatpush1.bf16.msra.mxu0 %v272
        %292 = vmatprep.subr.bf16.mxu0 0
        %293 = vmatpush1.bf16.msra.mxu0 %v271
        %294 = vmatprep.subr.bf16.mxu0 0
        %295 = vmatpush1.bf16.msra.mxu0 %v270
        %296 = vmatprep.subr.bf16.mxu0 0
        %297 = vmatpush1.bf16.msra.mxu0 %v269
        %298 = vmatprep.subr.bf16.mxu0 0
        %299 = vmatpush1.bf16.msra.mxu0 %v268
        %300 = vmatprep.subr.bf16.mxu0 0
        %301 = vmatpush2.bf16.msra.mxu0 0
        %302 = vmatprep.subr.bf16.mxu0 0
        %303 = vmatpush2.bf16.msra.mxu0 0
        %304 = vmatprep.subr.bf16.mxu0 0
        %305 = vmatpush2.bf16.msra.mxu0 0
        %306 = vmatprep.subr.bf16.mxu0 0
        %307 = vmatpush2.bf16.msra.mxu0 0
        %308 = vmatprep.subr.bf16.mxu0 0
        %309 = vmatpush2.bf16.msra.mxu0 0
        %310 = vmatprep.subr.bf16.mxu0 0
        %311 = vmatpush2.bf16.msra.mxu0 0
        %312 = vmatprep.subr.bf16.mxu0 0
        %313 = vmatpush2.bf16.msra.mxu0 0
        %314 = vmatprep.subr.bf16.mxu0 0
        %315 = vmatpush2.bf16.msra.mxu0 0
        %316 = vmatprep.mubr.bf16.mxu0 0
        %317 = vmatmul.mubr.bf16.gmra.mxu0 %v212
        %v318 = vpop.f32.mrf.mxu0
        %v319 = vadd.f32 %v234, %v318
        %v320 = vpop.f32.mrf.mxu0
        %v321 = vpop.f32.mrf.mxu0
        %v322 = vpop.f32.mrf.mxu0
        %323 = vdwg.mxu0
        %v324 = vmax.f32 %v319, 0.0
        %v325 = vpack.c.bf16 %v324, %v324
        %v326 = vld [vmem:[%s3] sm:$0xff]
        %v327 = vld [vmem:[%s3 + $0x8] sm:$0xff]
        %v328 = vld [vmem:[%s3 + $0x10] sm:$0xff]
        %v329 = vld [vmem:[%s3 + $0x18] sm:$0xff]
        %v330 = vld [vmem:[%s3 + $0x20] sm:$0xff]
        %v331 = vld [vmem:[%s3 + $0x28] sm:$0xff]
        %v332 = vld [vmem:[%s3 + $0x30] sm:$0xff]
        %v333 = vld [vmem:[%s3 + $0x38] sm:$0xff]
        %v334 = vld [vmem:[%s3 + $0x40] sm:$0xff]
        %v335 = vld [vmem:[%s3 + $0x48] sm:$0xff]
        %v336 = vld [vmem:[%s3 + $0x50] sm:$0xff]
        %v337 = vld [vmem:[%s3 + $0x58] sm:$0xff]
        %v338 = vld [vmem:[%s3 + $0x60] sm:$0xff]
        %v339 = vld [vmem:[%s3 + $0x68] sm:$0xff]
        %v340 = vld [vmem:[%s3 + $0x70] sm:$0xff]
        %v341 = vld [vmem:[%s3 + $0x78] sm:$0xff]
        %v358 = vunpack.c.l.b16 %v326
        %v359 = vunpack.c.h.b16 %v326
        %v360 = vunpack.c.l.b16 %v327
        %v361 = vunpack.c.h.b16 %v327
        %v362 = vunpack.c.l.b16 %v328
        %v363 = vunpack.c.h.b16 %v328
        %v364 = vunpack.c.l.b16 %v329
        %v365 = vunpack.c.h.b16 %v329
        %v366 = vunpack.c.l.b16 %v330
        %v367 = vunpack.c.h.b16 %v330
        %v368 = vunpack.c.l.b16 %v331
        %v369 = vunpack.c.h.b16 %v331
        %v370 = vunpack.c.l.b16 %v332
        %v371 = vunpack.c.h.b16 %v332
        %v372 = vunpack.c.l.b16 %v333
        %v373 = vunpack.c.h.b16 %v333
        %v374 = vunpack.c.l.b16 %v334
        %v375 = vunpack.c.h.b16 %v334
        %v376 = vunpack.c.l.b16 %v335
        %v377 = vunpack.c.h.b16 %v335
        %v378 = vunpack.c.l.b16 %v336
        %v379 = vunpack.c.h.b16 %v336
        %v380 = vunpack.c.l.b16 %v337
        %v381 = vunpack.c.h.b16 %v337
        %v382 = vunpack.c.l.b16 %v338
        %v383 = vunpack.c.h.b16 %v338
        %v384 = vunpack.c.l.b16 %v339
        %v385 = vunpack.c.h.b16 %v339
        %v386 = vunpack.c.l.b16 %v340
        %v387 = vunpack.c.h.b16 %v340
        %v388 = vunpack.c.l.b16 %v341
        %v389 = vunpack.c.h.b16 %v341
        %v390 = vpack.c.b16 %v360, %v358
        %v391 = vpack.c.b16 %v361, %v359
        %v392 = vpack.c.b16 %v364, %v362
        %v393 = vpack.c.b16 %v365, %v363
        %v394 = vpack.c.b16 %v368, %v366
        %v395 = vpack.c.b16 %v369, %v367
        %v396 = vpack.c.b16 %v372, %v370
        %v397 = vpack.c.b16 %v373, %v371
        %v398 = vpack.c.b16 %v376, %v374
        %v399 = vpack.c.b16 %v377, %v375
        %v400 = vpack.c.b16 %v380, %v378
        %v401 = vpack.c.b16 %v381, %v379
        %v402 = vpack.c.b16 %v384, %v382
        %v403 = vpack.c.b16 %v385, %v383
        %v404 = vpack.c.b16 %v388, %v386
        %v405 = vpack.c.b16 %v389, %v387
        %422 = vmatprep.subr.bf16.mxu0 %v405
        %423 = vmatpush1.bf16.msra.mxu0 %v404
        %424 = vmatprep.subr.bf16.mxu0 %v403
        %425 = vmatpush1.bf16.msra.mxu0 %v402
        %426 = vmatprep.subr.bf16.mxu0 %v401
        %427 = vmatpush1.bf16.msra.mxu0 %v400
        %428 = vmatprep.subr.bf16.mxu0 %v399
        %429 = vmatpush1.bf16.msra.mxu0 %v398
        %430 = vmatprep.subr.bf16.mxu0 %v397
        %431 = vmatpush1.bf16.msra.mxu0 %v396
        %432 = vmatprep.subr.bf16.mxu0 %v395
        %433 = vmatpush1.bf16.msra.mxu0 %v394
        %434 = vmatprep.subr.bf16.mxu0 %v393
        %435 = vmatpush1.bf16.msra.mxu0 %v392
        %436 = vmatprep.subr.bf16.mxu0 %v391
        %437 = vmatpush1.bf16.msra.mxu0 %v390
        %438 = vmatprep.subr.bf16.mxu0 0
        %439 = vmatpush2.bf16.msra.mxu0 0
        %440 = vmatprep.subr.bf16.mxu0 0
        %441 = vmatpush2.bf16.msra.mxu0 0
        %442 = vmatprep.subr.bf16.mxu0 0
        %443 = vmatpush2.bf16.msra.mxu0 0
        %444 = vmatprep.subr.bf16.mxu0 0
        %445 = vmatpush2.bf16.msra.mxu0 0
        %446 = vmatprep.subr.bf16.mxu0 0
        %447 = vmatpush2.bf16.msra.mxu0 0
        %448 = vmatprep.subr.bf16.mxu0 0
        %449 = vmatpush2.bf16.msra.mxu0 0
        %450 = vmatprep.subr.bf16.mxu0 0
        %451 = vmatpush2.bf16.msra.mxu0 0
        %452 = vmatprep.subr.bf16.mxu0 0
        %453 = vmatpush2.bf16.msra.mxu0 0
        %454 = vmatprep.mubr.bf16.mxu0 0
        %455 = vmatmul.mubr.bf16.gmra.mxu0 %v325
        %v456 = vpop.f32.mrf.mxu0
        %v457 = vadd.f32 0.0, %v456
        %v458 = vpop.f32.mrf.mxu0
        %v459 = vadd.f32 0.0, %v458
        %v460 = vpop.f32.mrf.mxu0
        %v461 = vpop.f32.mrf.mxu0
        %462 = vdwg.mxu0
        %463 = vst [vmem:[%s209] sm:$0xff] %v457
        %464 = vst [vmem:[%s209 + $0x8] sm:$0xff] %v459
        %p465 = scmp.lt.s32.totalorder %s16, 1
        %s466 = scalar_select %p465, %s16, 1
        %s467 = smul.addr %s466, 2
        %s468 = smul.addr %s467, 8
        %s469 = scalar_lea.vmem %s4, %s468
        // Predicated region
        $region41: #{_autoregressive_decode.1} parent=35 // pred_check
          %p470 = pneg %p123
        $region42: #{_autoregressive_decode.1} parent=35 // pred_check_branch
          %472 = sbr.rel (%p470) target = $region44
        $region43: #{_autoregressive_decode.1} parent=35 // pred_region
          _
        $region44: #{_autoregressive_decode.1} parent=35 // pred_fallthru
          _
      $region36: #{_autoregressive_decode.1} parent=5 // pred_fallthru
        _
      %p473 = scmp.le.s32.totalorder 2, %s11
      // Predicated region
      $region45: #{_autoregressive_decode.1} parent=5 // pred_check
        %p474 = pneg %p473
      $region46: #{_autoregressive_decode.1} parent=5 // pred_check_branch
        %476 = sbr.rel (%p474) target = $region48
      $region47: #{_autoregressive_decode.1} parent=5 // pred_region
        %s477 = ssub.s32 %s11, 2
        // Predicated region
        $region49: #{_autoregressive_decode.1} parent=47 // pred_check
          %p478 = pneg %p129
        $region50: #{_autoregressive_decode.1} parent=47 // pred_check_branch
          %480 = sbr.rel (%p478) target = $region52
        $region51: #{_autoregressive_decode.1} parent=47 // pred_region
          %p481 = scmp.lt.s32.totalorder %s17, 1
          %s482 = scalar_select %p481, %s17, 1
          %s483 = smul.addr %s482, 2
          %s484 = smul.addr %s483, 8
          %s485 = scalar_lea.vmem %s4, %s484
        $region52: #{_autoregressive_decode.1} parent=47 // pred_fallthru
          _
      $region48: #{_autoregressive_decode.1} parent=5 // pred_fallthru
        _
    $region6: #{_autoregressive_decode.1} parent=1 // loop_footer
      %s15 = sadd.s32 1, %s11
    $region7: #{_autoregressive_decode.1} parent=1 // loop_footer_branch
      %10 = sbr.rel target = $region3
    $region8: #{_autoregressive_decode.1} parent=1 // loop_exit
      _
    %486 = vsyncpa [#allocation3], 1
    %s487 = scalar_lea.sflag [#allocation3], 1
    %488 = vsyncpa %s487, 1

// kernel: body.11
$region0: #{body.11}
  #allocation0 [shape = 'u32[]', space=smem, size = 0x4, offset = 0x4, fixed_abs, tag = 'smem constant byte address 0x4 - core index']
  #allocation1 [shape = 'u32[144,128]{1,0:T(1,128)}', space=vmem, size = 0x12000, scoped, tag = 'internal scratch']
  %s0 = inlined_call_operand.vmem [shape: f32[8,128], index: 0, kind: input, shape index: {}]
  %s1 = inlined_call_operand.vmem [shape: bf16[128,16], index: 1, kind: input, shape index: {}]
  %s2 = inlined_call_operand.vmem [shape: bf16[16,128], index: 2, kind: input, shape index: {}]
  %s3 = inlined_call_operand.vmem [shape: f32[8,16], index: 3, kind: input, shape index: {}]
  %s4 = inlined_call_operand.vmem [shape: bf16[128,128], index: 4, kind: input, shape index: {}]
  %s5 = inlined_call_operand.vmem [shape: bf16[128,128], index: 5, kind: input, shape index: {}]
  %s6 = inlined_call_operand.vmem [shape: f32[1,128], index: 6, kind: input, shape index: {}]
  %s7 = inlined_call_operand.vmem [shape: bf16[128,128], index: 7, kind: input, shape index: {}]
  %s8 = inlined_call_operand.vmem [shape: f32[1,128], index: 8, kind: input, shape index: {}]
  %s9 = inlined_call_operand.vmem [shape: bf16[128,256], index: 9, kind: input, shape index: {}]
  %s10 = inlined_call_operand.vmem [shape: f32[8,128], index: 10, kind: output, shape index: {0}]
  %s11 = inlined_call_operand.vmem [shape: f32[8,128], index: 11, kind: output, shape index: {1}]
  %s12 = inlined_call_operand.vmem [shape: f32[8,256], index: 12, kind: output, shape index: {2}]
  %s13 = inlined_call_operand.vmem [shape: f32[8,128], index: 13, kind: output, shape index: {3}]
  %14 = xla_tuple %s10, %s11, %s12, %s13
  %s15 = sld [smem:[#allocation0]]
  $region74: #{body.11} parent=0
    _
  %s17 = ssub.s32 1, %s15
  %s18 = scalar_select 0, %s17, %s15
  // Predicated region
  $region2: #{body.11} parent=0 // pred_check
    _
  $region3: #{body.11} parent=0 // pred_check_branch
    %20 = sbr.rel (0) target = $region5
  $region4: #{body.11} parent=0 // pred_region
    _
  $region5: #{body.11} parent=0 // pred_fallthru
    _
  // Predicated region
  $region6: #{body.11} parent=0 // pred_check
    _
  $region7: #{body.11} parent=0 // pred_check_branch
    %22 = sbr.rel (0) target = $region9
  $region8: #{body.11} parent=0 // pred_region
    _
  $region9: #{body.11} parent=0 // pred_fallthru
    _
  // Predicated region
  $region10: #{body.11} parent=0 // pred_check
    _
  $region11: #{body.11} parent=0 // pred_check_branch
    %24 = sbr.rel (0) target = $region13
  $region12: #{body.11} parent=0 // pred_region
    _
  $region13: #{body.11} parent=0 // pred_fallthru
    _
  // Predicated region
  $region14: #{body.11} parent=0 // pred_check
    _
  $region15: #{body.11} parent=0 // pred_check_branch
    %26 = sbr.rel (0) target = $region17
  $region16: #{body.11} parent=0 // pred_region
    _
  $region17: #{body.11} parent=0 // pred_fallthru
    _
  // Predicated region
  $region18: #{body.11} parent=0 // pred_check
    _
  $region19: #{body.11} parent=0 // pred_check_branch
    %28 = sbr.rel (0) target = $region21
  $region20: #{body.11} parent=0 // pred_region
    _
  $region21: #{body.11} parent=0 // pred_fallthru
    _
  // Predicated region
  $region22: #{body.11} parent=0 // pred_check
    _
  $region23: #{body.11} parent=0 // pred_check_branch
    %30 = sbr.rel (0) target = $region25
  $region24: #{body.11} parent=0 // pred_region
    _
  $region25: #{body.11} parent=0 // pred_fallthru
    _
  // Predicated region
  $region26: #{body.11} parent=0 // pred_check
    _
  $region27: #{body.11} parent=0 // pred_check_branch
    %32 = sbr.rel (0) target = $region29
  $region28: #{body.11} parent=0 // pred_region
    _
  $region29: #{body.11} parent=0 // pred_fallthru
    _
  // Predicated region
  $region30: #{body.11} parent=0 // pred_check
    _
  $region31: #{body.11} parent=0 // pred_check_branch
    %34 = sbr.rel (0) target = $region33
  $region32: #{body.11} parent=0 // pred_region
    _
  $region33: #{body.11} parent=0 // pred_fallthru
    _
  // Predicated region
  $region34: #{body.11} parent=0 // pred_check
    _
  $region35: #{body.11} parent=0 // pred_check_branch
    %36 = sbr.rel (0) target = $region37
  $region36: #{body.11} parent=0 // pred_region
    _
  $region37: #{body.11} parent=0 // pred_fallthru
    _
  // Predicated region
  $region38: #{body.11} parent=0 // pred_check
    _
  $region39: #{body.11} parent=0 // pred_check_branch
    %38 = sbr.rel (0) target = $region41
  $region40: #{body.11} parent=0 // pred_region
    _
  $region41: #{body.11} parent=0 // pred_fallthru
    _
  %v40 = vld [vmem:[%s0] sm:$0xff]
  %v41 = vpack.c.bf16 %v40, %v40
  %v42 = vld [vmem:[%s4] sm:$0xf]
  %v43 = vld [vmem:[%s4 + $0x4] sm:$0xf]
  %v44 = vld [vmem:[%s4 + $0x8] sm:$0xf]
  %v45 = vld [vmem:[%s4 + $0xc] sm:$0xf]
  %v46 = vld [vmem:[%s4 + $0x10] sm:$0xf]
  %v47 = vld [vmem:[%s4 + $0x14] sm:$0xf]
  %v48 = vld [vmem:[%s4 + $0x18] sm:$0xf]
  %v49 = vld [vmem:[%s4 + $0x1c] sm:$0xf]
  %v50 = vld [vmem:[%s4 + $0x20] sm:$0xf]
  %v51 = vld [vmem:[%s4 + $0x24] sm:$0xf]
  %v52 = vld [vmem:[%s4 + $0x28] sm:$0xf]
  %v53 = vld [vmem:[%s4 + $0x2c] sm:$0xf]
  %v54 = vld [vmem:[%s4 + $0x30] sm:$0xf]
  %v55 = vld [vmem:[%s4 + $0x34] sm:$0xf]
  %v56 = vld [vmem:[%s4 + $0x38] sm:$0xf]
  %v57 = vld [vmem:[%s4 + $0x3c] sm:$0xf]
  %v74 = vunpack.c.l.b16 %v42
  %v75 = vunpack.c.l.b16 %v43
  %v76 = vunpack.c.l.b16 %v44
  %v77 = vunpack.c.l.b16 %v45
  %v78 = vunpack.c.l.b16 %v46
  %v79 = vunpack.c.l.b16 %v47
  %v80 = vunpack.c.l.b16 %v48
  %v81 = vunpack.c.l.b16 %v49
  %v82 = vunpack.c.l.b16 %v50
  %v83 = vunpack.c.l.b16 %v51
  %v84 = vunpack.c.l.b16 %v52
  %v85 = vunpack.c.l.b16 %v53
  %v86 = vunpack.c.l.b16 %v54
  %v87 = vunpack.c.l.b16 %v55
  %v88 = vunpack.c.l.b16 %v56
  %v89 = vunpack.c.l.b16 %v57
  %v90 = vpack.c.b16 %v75, %v74
  %v91 = vpack.c.b16 %v77, %v76
  %v92 = vpack.c.b16 %v79, %v78
  %v93 = vpack.c.b16 %v81, %v80
  %v94 = vpack.c.b16 %v83, %v82
  %v95 = vpack.c.b16 %v85, %v84
  %v96 = vpack.c.b16 %v87, %v86
  %v97 = vpack.c.b16 %v89, %v88
  %106 = vmatprep.subr.bf16.mxu0 0
  %107 = vmatpush1.bf16.msra.mxu0 %v97
  %108 = vmatprep.subr.bf16.mxu0 0
  %109 = vmatpush1.bf16.msra.mxu0 %v96
  %110 = vmatprep.subr.bf16.mxu0 0
  %111 = vmatpush1.bf16.msra.mxu0 %v95
  %112 = vmatprep.subr.bf16.mxu0 0
  %113 = vmatpush1.bf16.msra.mxu0 %v94
  %114 = vmatprep.subr.bf16.mxu0 0
  %115 = vmatpush1.bf16.msra.mxu0 %v93
  %116 = vmatprep.subr.bf16.mxu0 0
  %117 = vmatpush1.bf16.msra.mxu0 %v92
  %118 = vmatprep.subr.bf16.mxu0 0
  %119 = vmatpush1.bf16.msra.mxu0 %v91
  %120 = vmatprep.subr.bf16.mxu0 0
  %121 = vmatpush1.bf16.msra.mxu0 %v90
  %122 = vmatprep.subr.bf16.mxu0 0
  %123 = vmatpush2.bf16.msra.mxu0 0
  %124 = vmatprep.subr.bf16.mxu0 0
  %125 = vmatpush2.bf16.msra.mxu0 0
  %126 = vmatprep.subr.bf16.mxu0 0
  %127 = vmatpush2.bf16.msra.mxu0 0
  %128 = vmatprep.subr.bf16.mxu0 0
  %129 = vmatpush2.bf16.msra.mxu0 0
  %130 = vmatprep.subr.bf16.mxu0 0
  %131 = vmatpush2.bf16.msra.mxu0 0
  %132 = vmatprep.subr.bf16.mxu0 0
  %133 = vmatpush2.bf16.msra.mxu0 0
  %134 = vmatprep.subr.bf16.mxu0 0
  %135 = vmatpush2.bf16.msra.mxu0 0
  %136 = vmatprep.subr.bf16.mxu0 0
  %137 = vmatpush2.bf16.msra.mxu0 0
  %138 = vmatprep.mubr.bf16.mxu0 0
  %139 = vmatmul.mubr.bf16.gmra.mxu0 %v41
  %v140 = vpop.f32.mrf.mxu0
  %v141 = vadd.f32 0.0, %v140
  %v142 = vpop.f32.mrf.mxu0
  %v143 = vpop.f32.mrf.mxu0
  %v144 = vpop.f32.mrf.mxu0
  %145 = vdwg.mxu0
  %v146 = vpack.c.bf16 %v141, %v141
  %v147 = vld [vmem:[%s1] sm:$0xf]
  %v148 = vld [vmem:[%s1 + $0x4] sm:$0xf]
  %v149 = vld [vmem:[%s1 + $0x8] sm:$0xf]
  %v150 = vld [vmem:[%s1 + $0xc] sm:$0xf]
  %v151 = vld [vmem:[%s1 + $0x10] sm:$0xf]
  %v152 = vld [vmem:[%s1 + $0x14] sm:$0xf]
  %v153 = vld [vmem:[%s1 + $0x18] sm:$0xf]
  %v154 = vld [vmem:[%s1 + $0x1c] sm:$0xf]
  %v155 = vld [vmem:[%s1 + $0x20] sm:$0xf]
  %v156 = vld [vmem:[%s1 + $0x24] sm:$0xf]
  %v157 = vld [vmem:[%s1 + $0x28] sm:$0xf]
  %v158 = vld [vmem:[%s1 + $0x2c] sm:$0xf]
  %v159 = vld [vmem:[%s1 + $0x30] sm:$0xf]
  %v160 = vld [vmem:[%s1 + $0x34] sm:$0xf]
  %v161 = vld [vmem:[%s1 + $0x38] sm:$0xf]
  %v162 = vld [vmem:[%s1 + $0x3c] sm:$0xf]
  %v179 = vunpack.c.l.b16 %v147
  %v180 = vunpack.c.l.b16 %v148
  %v181 = vunpack.c.l.b16 %v149
  %v182 = vunpack.c.l.b16 %v150
  %v183 = vunpack.c.l.b16 %v151
  %v184 = vunpack.c.l.b16 %v152
  %v185 = vunpack.c.l.b16 %v153
  %v186 = vunpack.c.l.b16 %v154
  %v187 = vunpack.c.l.b16 %v155
  %v188 = vunpack.c.l.b16 %v156
  %v189 = vunpack.c.l.b16 %v157
  %v190 = vunpack.c.l.b16 %v158
  %v191 = vunpack.c.l.b16 %v159
  %v192 = vunpack.c.l.b16 %v160
  %v193 = vunpack.c.l.b16 %v161
  %v194 = vunpack.c.l.b16 %v162
  %v195 = vpack.c.b16 %v180, %v179
  %v196 = vpack.c.b16 %v182, %v181
  %v197 = vpack.c.b16 %v184, %v183
  %v198 = vpack.c.b16 %v186, %v185
  %v199 = vpack.c.b16 %v188, %v187
  %v200 = vpack.c.b16 %v190, %v189
  %v201 = vpack.c.b16 %v192, %v191
  %v202 = vpack.c.b16 %v194, %v193
  %211 = vmatprep.subr.bf16.mxu0 0
  %212 = vmatpush1.bf16.msra.mxu0 %v202
  %213 = vmatprep.subr.bf16.mxu0 0
  %214 = vmatpush1.bf16.msra.mxu0 %v201
  %215 = vmatprep.subr.bf16.mxu0 0
  %216 = vmatpush1.bf16.msra.mxu0 %v200
  %217 = vmatprep.subr.bf16.mxu0 0
  %218 = vmatpush1.bf16.msra.mxu0 %v199
  %219 = vmatprep.subr.bf16.mxu0 0
  %220 = vmatpush1.bf16.msra.mxu0 %v198
  %221 = vmatprep.subr.bf16.mxu0 0
  %222 = vmatpush1.bf16.msra.mxu0 %v197
  %223 = vmatprep.subr.bf16.mxu0 0
  %224 = vmatpush1.bf16.msra.mxu0 %v196
  %225 = vmatprep.subr.bf16.mxu0 0
  %226 = vmatpush1.bf16.msra.mxu0 %v195
  %227 = vmatprep.subr.bf16.mxu0 0
  %228 = vmatpush2.bf16.msra.mxu0 0
  %229 = vmatprep.subr.bf16.mxu0 0
  %230 = vmatpush2.bf16.msra.mxu0 0
  %231 = vmatprep.subr.bf16.mxu0 0
  %232 = vmatpush2.bf16.msra.mxu0 0
  %233 = vmatprep.subr.bf16.mxu0 0
  %234 = vmatpush2.bf16.msra.mxu0 0
  %235 = vmatprep.subr.bf16.mxu0 0
  %236 = vmatpush2.bf16.msra.mxu0 0
  %237 = vmatprep.subr.bf16.mxu0 0
  %238 = vmatpush2.bf16.msra.mxu0 0
  %239 = vmatprep.subr.bf16.mxu0 0
  %240 = vmatpush2.bf16.msra.mxu0 0
  %241 = vmatprep.subr.bf16.mxu0 0
  %242 = vmatpush2.bf16.msra.mxu0 0
  %243 = vmatprep.mubr.bf16.mxu0 0
  %244 = vmatmul.mubr.bf16.gmra.mxu0 %v146
  %v245 = vpop.f32.mrf.mxu0
  %v246 = vadd.f32 0.0, %v245
  %v247 = vpop.f32.mrf.mxu0
  %v248 = vpop.f32.mrf.mxu0
  %v249 = vpop.f32.mrf.mxu0
  %250 = vdwg.mxu0
  %v251 = vmul.f32 %v246, 0.17677669
  %v252 = vld [vmem:[%s3] sm:$0xff]
  %v253 = vadd.f32 %v251, %v252
  %vm254 = vcmask 130048
  %v255 = vsel %vm254, %v253, -inf
  %256 = vmax.xlane.f32.xlu0 %v255
  %v257 = vpop.xlane.xlu0 %256
  %v258 = vsub.f32 %v253, %v257
  %v259 = vmul.f32 %v258, 1.442695
  %v260 = vpow.pop %v259
  %v261 = vsel %vm254, %v260, 0.0
  %262 = vadd.xlane.f32.xlu0 %v261
  %v263 = vpop.xlane.xlu0 %262
  %v264 = vrcp.pop %v263
  %v265 = vmul.f32 %v260, %v264
  %v266 = vpack.c.bf16 %v265, %v265
  %v267 = vld [vmem:[%s2] sm:$0xf]
  %v268 = vld [vmem:[%s2 + $0x4] sm:$0xf]
  %v271 = vunpack.c.l.b16 %v267
  %v272 = vunpack.c.l.b16 %v268
  %v273 = vpack.c.b16 %v272, %v271
  %v276 = vsel %vm254, %v266, 0
  %278 = vmatprep.subr.bf16.mxu0 0
  %279 = vmatpush1.bf16.msra.mxu0 0
  %280 = vmatprep.subr.bf16.mxu0 0
  %281 = vmatpush1.bf16.msra.mxu0 0
  %282 = vmatprep.subr.bf16.mxu0 0
  %283 = vmatpush1.bf16.msra.mxu0 0
  %284 = vmatprep.subr.bf16.mxu0 0
  %285 = vmatpush1.bf16.msra.mxu0 0
  %286 = vmatprep.subr.bf16.mxu0 0
  %287 = vmatpush1.bf16.msra.mxu0 0
  %288 = vmatprep.subr.bf16.mxu0 0
  %289 = vmatpush1.bf16.msra.mxu0 0
  %290 = vmatprep.subr.bf16.mxu0 0
  %291 = vmatpush1.bf16.msra.mxu0 0
  %292 = vmatprep.subr.bf16.mxu0 0
  %293 = vmatpush1.bf16.msra.mxu0 %v273
  %294 = vmatprep.subr.bf16.mxu0 0
  %295 = vmatpush2.bf16.msra.mxu0 0
  %296 = vmatprep.subr.bf16.mxu0 0
  %297 = vmatpush2.bf16.msra.mxu0 0
  %298 = vmatprep.subr.bf16.mxu0 0
  %299 = vmatpush2.bf16.msra.mxu0 0
  %300 = vmatprep.subr.bf16.mxu0 0
  %301 = vmatpush2.bf16.msra.mxu0 0
  %302 = vmatprep.subr.bf16.mxu0 0
  %303 = vmatpush2.bf16.msra.mxu0 0
  %304 = vmatprep.subr.bf16.mxu0 0
  %305 = vmatpush2.bf16.msra.mxu0 0
  %306 = vmatprep.subr.bf16.mxu0 0
  %307 = vmatpush2.bf16.msra.mxu0 0
  %308 = vmatprep.subr.bf16.mxu0 0
  %309 = vmatpush2.bf16.msra.mxu0 0
  %310 = vmatprep.mubr.bf16.mxu0 0
  %311 = vmatmul.mubr.bf16.gmra.mxu0 %v276
  %v312 = vpop.f32.mrf.mxu0
  %v313 = vadd.f32 0.0, %v312
  %v314 = vpop.f32.mrf.mxu0
  %v315 = vpop.f32.mrf.mxu0
  %v316 = vpop.f32.mrf.mxu0
  %317 = vdwg.mxu0
  %v318 = vadd.f32 %v40, %v313
  %v319 = vpack.c.bf16 %v318, %v318
  %v320 = vld [vmem:[%s5] sm:$0xf]
  %v321 = vld [vmem:[%s5 + $0x4] sm:$0xf]
  %v322 = vld [vmem:[%s5 + $0x8] sm:$0xf]
  %v323 = vld [vmem:[%s5 + $0xc] sm:$0xf]
  %v324 = vld [vmem:[%s5 + $0x10] sm:$0xf]
  %v325 = vld [vmem:[%s5 + $0x14] sm:$0xf]
  %v326 = vld [vmem:[%s5 + $0x18] sm:$0xf]
  %v327 = vld [vmem:[%s5 + $0x1c] sm:$0xf]
  %v328 = vld [vmem:[%s5 + $0x20] sm:$0xf]
  %v329 = vld [vmem:[%s5 + $0x24] sm:$0xf]
  %v330 = vld [vmem:[%s5 + $0x28] sm:$0xf]
  %v331 = vld [vmem:[%s5 + $0x2c] sm:$0xf]
  %v332 = vld [vmem:[%s5 + $0x30] sm:$0xf]
  %v333 = vld [vmem:[%s5 + $0x34] sm:$0xf]
  %v334 = vld [vmem:[%s5 + $0x38] sm:$0xf]
  %v335 = vld [vmem:[%s5 + $0x3c] sm:$0xf]
  %v336 = vld [vmem:[%s6] sm:$0x1]
  %v338 = vlaneseq
  %v339 = vshrl.u32 %v338, 7
  %v340 = vsub.s32 0, %v339
  %v341 = vrot.slane %v336, %v340
  %v359 = vunpack.c.l.b16 %v320
  %v360 = vunpack.c.l.b16 %v321
  %v361 = vunpack.c.l.b16 %v322
  %v362 = vunpack.c.l.b16 %v323
  %v363 = vunpack.c.l.b16 %v324
  %v364 = vunpack.c.l.b16 %v325
  %v365 = vunpack.c.l.b16 %v326
  %v366 = vunpack.c.l.b16 %v327
  %v367 = vunpack.c.l.b16 %v328
  %v368 = vunpack.c.l.b16 %v329
  %v369 = vunpack.c.l.b16 %v330
  %v370 = vunpack.c.l.b16 %v331
  %v371 = vunpack.c.l.b16 %v332
  %v372 = vunpack.c.l.b16 %v333
  %v373 = vunpack.c.l.b16 %v334
  %v374 = vunpack.c.l.b16 %v335
  %v375 = vpack.c.b16 %v360, %v359
  %v376 = vpack.c.b16 %v362, %v361
  %v377 = vpack.c.b16 %v364, %v363
  %v378 = vpack.c.b16 %v366, %v365
  %v379 = vpack.c.b16 %v368, %v367
  %v380 = vpack.c.b16 %v370, %v369
  %v381 = vpack.c.b16 %v372, %v371
  %v382 = vpack.c.b16 %v374, %v373
  %391 = vmatprep.subr.bf16.mxu0 0
  %392 = vmatpush1.bf16.msra.mxu0 %v382
  %393 = vmatprep.subr.bf16.mxu0 0
  %394 = vmatpush1.bf16.msra.mxu0 %v381
  %395 = vmatprep.subr.bf16.mxu0 0
  %396 = vmatpush1.bf16.msra.mxu0 %v380
  %397 = vmatprep.subr.bf16.mxu0 0
  %398 = vmatpush1.bf16.msra.mxu0 %v379
  %399 = vmatprep.subr.bf16.mxu0 0
  %400 = vmatpush1.bf16.msra.mxu0 %v378
  %401 = vmatprep.subr.bf16.mxu0 0
  %402 = vmatpush1.bf16.msra.mxu0 %v377
  %403 = vmatprep.subr.bf16.mxu0 0
  %404 = vmatpush1.bf16.msra.mxu0 %v376
  %405 = vmatprep.subr.bf16.mxu0 0
  %406 = vmatpush1.bf16.msra.mxu0 %v375
  %407 = vmatprep.subr.bf16.mxu0 0
  %408 = vmatpush2.bf16.msra.mxu0 0
  %409 = vmatprep.subr.bf16.mxu0 0
  %410 = vmatpush2.bf16.msra.mxu0 0
  %411 = vmatprep.subr.bf16.mxu0 0
  %412 = vmatpush2.bf16.msra.mxu0 0
  %413 = vmatprep.subr.bf16.mxu0 0
  %414 = vmatpush2.bf16.msra.mxu0 0
  %415 = vmatprep.subr.bf16.mxu0 0
  %416 = vmatpush2.bf16.msra.mxu0 0
  %417 = vmatprep.subr.bf16.mxu0 0
  %418 = vmatpush2.bf16.msra.mxu0 0
  %419 = vmatprep.subr.bf16.mxu0 0
  %420 = vmatpush2.bf16.msra.mxu0 0
  %421 = vmatprep.subr.bf16.mxu0 0
  %422 = vmatpush2.bf16.msra.mxu0 0
  %423 = vmatprep.mubr.bf16.mxu0 0
  %424 = vmatmul.mubr.bf16.gmra.mxu0 %v319
  %v425 = vpop.f32.mrf.mxu0
  %v426 = vadd.f32 %v341, %v425
  %v427 = vpop.f32.mrf.mxu0
  %v428 = vpop.f32.mrf.mxu0
  %v429 = vpop.f32.mrf.mxu0
  %430 = vdwg.mxu0
  %v431 = vmax.f32 %v426, 0.0
  %v432 = vpack.c.bf16 %v431, %v431
  %v433 = vld [vmem:[%s7] sm:$0xf]
  %v434 = vld [vmem:[%s7 + $0x4] sm:$0xf]
  %v435 = vld [vmem:[%s7 + $0x8] sm:$0xf]
  %v436 = vld [vmem:[%s7 + $0xc] sm:$0xf]
  %v437 = vld [vmem:[%s7 + $0x10] sm:$0xf]
  %v438 = vld [vmem:[%s7 + $0x14] sm:$0xf]
  %v439 = vld [vmem:[%s7 + $0x18] sm:$0xf]
  %v440 = vld [vmem:[%s7 + $0x1c] sm:$0xf]
  %v441 = vld [vmem:[%s7 + $0x20] sm:$0xf]
  %v442 = vld [vmem:[%s7 + $0x24] sm:$0xf]
  %v443 = vld [vmem:[%s7 + $0x28] sm:$0xf]
  %v444 = vld [vmem:[%s7 + $0x2c] sm:$0xf]
  %v445 = vld [vmem:[%s7 + $0x30] sm:$0xf]
  %v446 = vld [vmem:[%s7 + $0x34] sm:$0xf]
  %v447 = vld [vmem:[%s7 + $0x38] sm:$0xf]
  %v448 = vld [vmem:[%s7 + $0x3c] sm:$0xf]
  %v449 = vld [vmem:[%s8] sm:$0x1]
  %v451 = vlaneseq
  %v452 = vshrl.u32 %v451, 7
  %v453 = vsub.s32 0, %v452
  %v454 = vrot.slane %v449, %v453
  %v472 = vunpack.c.l.b16 %v433
  %v473 = vunpack.c.l.b16 %v434
  %v474 = vunpack.c.l.b16 %v435
  %v475 = vunpack.c.l.b16 %v436
  %v476 = vunpack.c.l.b16 %v437
  %v477 = vunpack.c.l.b16 %v438
  %v478 = vunpack.c.l.b16 %v439
  %v479 = vunpack.c.l.b16 %v440
  %v480 = vunpack.c.l.b16 %v441
  %v481 = vunpack.c.l.b16 %v442
  %v482 = vunpack.c.l.b16 %v443
  %v483 = vunpack.c.l.b16 %v444
  %v484 = vunpack.c.l.b16 %v445
  %v485 = vunpack.c.l.b16 %v446
  %v486 = vunpack.c.l.b16 %v447
  %v487 = vunpack.c.l.b16 %v448
  %v488 = vpack.c.b16 %v473, %v472
  %v489 = vpack.c.b16 %v475, %v474
  %v490 = vpack.c.b16 %v477, %v476
  %v491 = vpack.c.b16 %v479, %v478
  %v492 = vpack.c.b16 %v481, %v480
  %v493 = vpack.c.b16 %v483, %v482
  %v494 = vpack.c.b16 %v485, %v484
  %v495 = vpack.c.b16 %v487, %v486
  %504 = vmatprep.subr.bf16.mxu0 0
  %505 = vmatpush1.bf16.msra.mxu0 %v495
  %506 = vmatprep.subr.bf16.mxu0 0
  %507 = vmatpush1.bf16.msra.mxu0 %v494
  %508 = vmatprep.subr.bf16.mxu0 0
  %509 = vmatpush1.bf16.msra.mxu0 %v493
  %510 = vmatprep.subr.bf16.mxu0 0
  %511 = vmatpush1.bf16.msra.mxu0 %v492
  %512 = vmatprep.subr.bf16.mxu0 0
  %513 = vmatpush1.bf16.msra.mxu0 %v491
  %514 = vmatprep.subr.bf16.mxu0 0
  %515 = vmatpush1.bf16.msra.mxu0 %v490
  %516 = vmatprep.subr.bf16.mxu0 0
  %517 = vmatpush1.bf16.msra.mxu0 %v489
  %518 = vmatprep.subr.bf16.mxu0 0
  %519 = vmatpush1.bf16.msra.mxu0 %v488
  %520 = vmatprep.subr.bf16.mxu0 0
  %521 = vmatpush2.bf16.msra.mxu0 0
  %522 = vmatprep.subr.bf16.mxu0 0
  %523 = vmatpush2.bf16.msra.mxu0 0
  %524 = vmatprep.subr.bf16.mxu0 0
  %525 = vmatpush2.bf16.msra.mxu0 0
  %526 = vmatprep.subr.bf16.mxu0 0
  %527 = vmatpush2.bf16.msra.mxu0 0
  %528 = vmatprep.subr.bf16.mxu0 0
  %529 = vmatpush2.bf16.msra.mxu0 0
  %530 = vmatprep.subr.bf16.mxu0 0
  %531 = vmatpush2.bf16.msra.mxu0 0
  %532 = vmatprep.subr.bf16.mxu0 0
  %533 = vmatpush2.bf16.msra.mxu0 0
  %534 = vmatprep.subr.bf16.mxu0 0
  %535 = vmatpush2.bf16.msra.mxu0 0
  %536 = vmatprep.mubr.bf16.mxu0 0
  %537 = vmatmul.mubr.bf16.gmra.mxu0 %v432
  %v538 = vpop.f32.mrf.mxu0
  %v539 = vadd.f32 %v454, %v538
  %v540 = vpop.f32.mrf.mxu0
  %v541 = vpop.f32.mrf.mxu0
  %v542 = vpop.f32.mrf.mxu0
  %543 = vdwg.mxu0
  %544 = vmax.xlane.f32.xlu0 %v539
  %v545 = vpop.xlane.xlu0 %544
  %v546 = vsub.f32 %v539, %v545
  %v547 = vmul.f32 %v546, 1.442695
  %v548 = vpow.pop %v547
  %549 = vadd.xlane.f32.xlu0 %v548
  %v550 = vpop.xlane.xlu0 %549
  %v551 = vrcp.pop %v550
  %v552 = vmul.f32 %v548, %v551
  %553 = vst [vmem:[%s10] sm:$0xff] %v539
  %554 = vst [vmem:[%s11] sm:$0xff] %v552
  %v555 = vpack.c.bf16 %v552, %v552
  %v556 = vld [vmem:[%s9] sm:$0xff]
  %v557 = vld [vmem:[%s9 + $0x8] sm:$0xff]
  %v558 = vld [vmem:[%s9 + $0x10] sm:$0xff]
  %v559 = vld [vmem:[%s9 + $0x18] sm:$0xff]
  %v560 = vld [vmem:[%s9 + $0x20] sm:$0xff]
  %v561 = vld [vmem:[%s9 + $0x28] sm:$0xff]
  %v562 = vld [vmem:[%s9 + $0x30] sm:$0xff]
  %v563 = vld [vmem:[%s9 + $0x38] sm:$0xff]
  %v564 = vld [vmem:[%s9 + $0x40] sm:$0xff]
  %v565 = vld [vmem:[%s9 + $0x48] sm:$0xff]
  %v566 = vld [vmem:[%s9 + $0x50] sm:$0xff]
  %v567 = vld [vmem:[%s9 + $0x58] sm:$0xff]
  %v568 = vld [vmem:[%s9 + $0x60] sm:$0xff]
  %v569 = vld [vmem:[%s9 + $0x68] sm:$0xff]
  %v570 = vld [vmem:[%s9 + $0x70] sm:$0xff]
  %v571 = vld [vmem:[%s9 + $0x78] sm:$0xff]
  %v588 = vunpack.c.l.b16 %v556
  %v589 = vunpack.c.h.b16 %v556
  %v590 = vunpack.c.l.b16 %v557
  %v591 = vunpack.c.h.b16 %v557
  %v592 = vunpack.c.l.b16 %v558
  %v593 = vunpack.c.h.b16 %v558
  %v594 = vunpack.c.l.b16 %v559
  %v595 = vunpack.c.h.b16 %v559
  %v596 = vunpack.c.l.b16 %v560
  %v597 = vunpack.c.h.b16 %v560
  %v598 = vunpack.c.l.b16 %v561
  %v599 = vunpack.c.h.b16 %v561
  %v600 = vunpack.c.l.b16 %v562
  %v601 = vunpack.c.h.b16 %v562
  %v602 = vunpack.c.l.b16 %v563
  %v603 = vunpack.c.h.b16 %v563
  %v604 = vunpack.c.l.b16 %v564
  %v605 = vunpack.c.h.b16 %v564
  %v606 = vunpack.c.l.b16 %v565
  %v607 = vunpack.c.h.b16 %v565
  %v608 = vunpack.c.l.b16 %v566
  %v609 = vunpack.c.h.b16 %v566
  %v610 = vunpack.c.l.b16 %v567
  %v611 = vunpack.c.h.b16 %v567
  %v612 = vunpack.c.l.b16 %v568
  %v613 = vunpack.c.h.b16 %v568
  %v614 = vunpack.c.l.b16 %v569
  %v615 = vunpack.c.h.b16 %v569
  %v616 = vunpack.c.l.b16 %v570
  %v617 = vunpack.c.h.b16 %v570
  %v618 = vunpack.c.l.b16 %v571
  %v619 = vunpack.c.h.b16 %v571
  %v620 = vpack.c.b16 %v590, %v588
  %v621 = vpack.c.b16 %v591, %v589
  %v622 = vpack.c.b16 %v594, %v592
  %v623 = vpack.c.b16 %v595, %v593
  %v624 = vpack.c.b16 %v598, %v596
  %v625 = vpack.c.b16 %v599, %v597
  %v626 = vpack.c.b16 %v602, %v600
  %v627 = vpack.c.b16 %v603, %v601
  %v628 = vpack.c.b16 %v606, %v604
  %v629 = vpack.c.b16 %v607, %v605
  %v630 = vpack.c.b16 %v610, %v608
  %v631 = vpack.c.b16 %v611, %v609
  %v632 = vpack.c.b16 %v614, %v612
  %v633 = vpack.c.b16 %v615, %v613
  %v634 = vpack.c.b16 %v618, %v616
  %v635 = vpack.c.b16 %v619, %v617
  %652 = vmatprep.subr.bf16.mxu0 %v635
  %653 = vmatpush1.bf16.msra.mxu0 %v634
  %654 = vmatprep.subr.bf16.mxu0 %v633
  %655 = vmatpush1.bf16.msra.mxu0 %v632
  %656 = vmatprep.subr.bf16.mxu0 %v631
  %657 = vmatpush1.bf16.msra.mxu0 %v630
  %658 = vmatprep.subr.bf16.mxu0 %v629
  %659 = vmatpush1.bf16.msra.mxu0 %v628
  %660 = vmatprep.subr.bf16.mxu0 %v627
  %661 = vmatpush1.bf16.msra.mxu0 %v626
  %662 = vmatprep.subr.bf16.mxu0 %v625
  %663 = vmatpush1.bf16.msra.mxu0 %v624
  %664 = vmatprep.subr.bf16.mxu0 %v623
  %665 = vmatpush1.bf16.msra.mxu0 %v622
  %666 = vmatprep.subr.bf16.mxu0 %v621
  %667 = vmatpush1.bf16.msra.mxu0 %v620
  %668 = vmatprep.subr.bf16.mxu0 0
  %669 = vmatpush2.bf16.msra.mxu0 0
  %670 = vmatprep.subr.bf16.mxu0 0
  %671 = vmatpush2.bf16.msra.mxu0 0
  %672 = vmatprep.subr.bf16.mxu0 0
  %673 = vmatpush2.bf16.msra.mxu0 0
  %674 = vmatprep.subr.bf16.mxu0 0
  %675 = vmatpush2.bf16.msra.mxu0 0
  %676 = vmatprep.subr.bf16.mxu0 0
  %677 = vmatpush2.bf16.msra.mxu0 0
  %678 = vmatprep.subr.bf16.mxu0 0
  %679 = vmatpush2.bf16.msra.mxu0 0
  %680 = vmatprep.subr.bf16.mxu0 0
  %681 = vmatpush2.bf16.msra.mxu0 0
  %682 = vmatprep.subr.bf16.mxu0 0
  %683 = vmatpush2.bf16.msra.mxu0 0
  %684 = vmatprep.mubr.bf16.mxu0 0
  %685 = vmatmul.mubr.bf16.gmra.mxu0 %v555
  %v686 = vpop.f32.mrf.mxu0
  %v687 = vadd.f32 0.0, %v686
  %v688 = vpop.f32.mrf.mxu0
  %v689 = vadd.f32 0.0, %v688
  %v690 = vpop.f32.mrf.mxu0
  %v691 = vpop.f32.mrf.mxu0
  %692 = vdwg.mxu0
  %693 = vst [vmem:[%s12] sm:$0xff] %v687
  %694 = vst [vmem:[%s12 + $0x8] sm:$0xff] %v689
  %695 = vst [vmem:[%s13] sm:$0xff] %v431
  // Predicated region
  $region42: #{body.11} parent=0 // pred_check
    _
  $region43: #{body.11} parent=0 // pred_check_branch
    %697 = sbr.rel (0) target = $region45
  $region44: #{body.11} parent=0 // pred_region
    _
  $region45: #{body.11} parent=0 // pred_fallthru
    _
  // Predicated region
  $region46: #{body.11} parent=0 // pred_check
    _
  $region47: #{body.11} parent=0 // pred_check_branch
    %699 = sbr.rel (0) target = $region49
  $region48: #{body.11} parent=0 // pred_region
    _
  $region49: #{body.11} parent=0 // pred_fallthru
    _
  // Predicated region
  $region50: #{body.11} parent=0 // pred_check
    _
  $region51: #{body.11} parent=0 // pred_check_branch
    %701 = sbr.rel (0) target = $region53
  $region52: #{body.11} parent=0 // pred_region
    _
  $region53: #{body.11} parent=0 // pred_fallthru
    _
  // Predicated region
  $region54: #{body.11} parent=0 // pred_check
    _
  $region55: #{body.11} parent=0 // pred_check_branch
    %703 = sbr.rel (0) target = $region57
  $region56: #{body.11} parent=0 // pred_region
    _
  $region57: #{body.11} parent=0 // pred_fallthru
    _
  // Predicated region
  $region58: #{body.11} parent=0 // pred_check
    _
  $region59: #{body.11} parent=0 // pred_check_branch
    %705 = sbr.rel (0) target = $region61
  $region60: #{body.11} parent=0 // pred_region
    _
  $region61: #{body.11} parent=0 // pred_fallthru
    _
  // Predicated region
  $region62: #{body.11} parent=0 // pred_check
    _
  $region63: #{body.11} parent=0 // pred_check_branch
    %707 = sbr.rel (0) target = $region65
  $region64: #{body.11} parent=0 // pred_region
    _
  $region65: #{body.11} parent=0 // pred_fallthru
    _
  // Predicated region
  $region66: #{body.11} parent=0 // pred_check
    _
  $region67: #{body.11} parent=0 // pred_check_branch
    %709 = sbr.rel (0) target = $region69
  $region68: #{body.11} parent=0 // pred_region
    _
  $region69: #{body.11} parent=0 // pred_fallthru
    _
  // Predicated region
  $region70: #{body.11} parent=0 // pred_check
    _
  $region71: #{body.11} parent=0 // pred_check_branch
    %711 = sbr.rel (0) target = $region73
  $region72: #{body.11} parent=0 // pred_region
    _
  $region73: #{body.11} parent=0 // pred_fallthru
    _

</llo_original>
